<compile_context>
chip_gen: v5e
topology: v5e:2x2
jax: 0.10.0
libtpu: 0.0.40
codegen_flags: <defaults>
</compile_context>

<pallas_src>
import functools
import math

import jax
import jax.numpy as jnp
from jax.experimental import pallas as pl
from jax.experimental.pallas import tpu as pltpu

# ------------------------------ small BERT config -----------------------------
VOCAB = 100
TYPE_VOCAB = 2
MAX_POS = 16
HIDDEN = 32
N_HEADS = 2
HEAD_DIM = HIDDEN // N_HEADS
N_LAYERS = 2
INTERMEDIATE = 64
LN_EPS = 1e-12


# --------------------------------- fused kernel --------------------------------


def _encoder_kernel(emb_ref, maskb_ref,
                    emb_g_ref, emb_b_ref,
                    wqkv_ref, bqkv_ref, wo_ref, bo_ref, ln1g_ref, ln1b_ref,
                    w1_ref, b1_ref, w2_ref, b2_ref, ln2g_ref, ln2b_ref,
                    wp_ref, bp_ref,
                    seq_ref, pooled_ref, *, bsz, seqlen):
    """Whole BERT encoder: emb-LN -> N transformer layers -> pooler, all in VMEM."""
    f32 = jnp.float32
    scale = 1.0 / math.sqrt(HEAD_DIM)
    n_layers = wqkv_ref.shape[0]

    def layernorm(x, g, b):
        # f32 statistics (v5e has no bf16 VPU/EUP path).
        mu = jnp.mean(x, axis=-1, keepdims=True)
        var = jnp.mean(jnp.square(x - mu), axis=-1, keepdims=True)
        return (x - mu) * jax.lax.rsqrt(var + LN_EPS) * g + b

    def erf(x):
        # Abramowitz & Stegun 7.1.26 (max abs err ~1.5e-7): exact-GELU semantics
        # within f32 noise, using only exp / mul / add / select.
        a1, a2, a3, a4, a5 = 0.254829592, -0.284496736, 1.421413741, -1.453152027, 1.061405429
        p = 0.3275911
        sgn = jnp.where(x >= 0.0, 1.0, -1.0)
        ax = jnp.abs(x)
        t = 1.0 / (1.0 + p * ax)
        poly = ((((a5 * t + a4) * t + a3) * t + a2) * t + a1) * t
        return sgn * (1.0 - poly * jnp.exp(-ax * ax))

    def gelu_exact(x):
        return 0.5 * x * (1.0 + erf(x * 0.7071067811865476))

    maskb = maskb_ref[...]                      # (B, S) additive mask bias
    h = layernorm(emb_ref[...], emb_g_ref[...], emb_b_ref[...])   # embedding LN

    # Layer loop: N_LAYERS is tiny and static -> fully unrolled for best
    # scheduler visibility (weights indexed with static leading-axis indices).
    for l in range(n_layers):
        # ---- fused Q|K|V projection: (M, H) @ (H, 3H) + bias -----------------
        qkv = jnp.dot(h, wqkv_ref[l], preferred_element_type=f32) + bqkv_ref[l]

        # ---- multi-head attention (batches & heads unrolled, static slices) --
        ctx_rows = []
        for bi in range(bsz):
            r0 = bi * seqlen
            mrow = maskb[bi:bi + 1, :]                               # (1, S)
            head_ctx = []
            for hh in range(N_HEADS):
                c0 = hh * HEAD_DIM
                q = qkv[r0:r0 + seqlen, c0:c0 + HEAD_DIM]
                k = qkv[r0:r0 + seqlen, HIDDEN + c0:HIDDEN + c0 + HEAD_DIM]
                v = qkv[r0:r0 + seqlen, 2 * HIDDEN + c0:2 * HIDDEN + c0 + HEAD_DIM]
                # q @ k^T via dot_general contracting on last dims.
                s = jax.lax.dot_general(q, k, (((1,), (1,)), ((), ())),
                                        preferred_element_type=f32) * scale
                s = s + mrow
                s = s - jnp.max(s, axis=-1, keepdims=True)
                p = jnp.exp(s)
                p = p / jnp.sum(p, axis=-1, keepdims=True)
                head_ctx.append(jnp.dot(p, v, preferred_element_type=f32))
            ctx_rows.append(jnp.concatenate(head_ctx, axis=1))       # (S, H)
        ctx = jnp.concatenate(ctx_rows, axis=0)                      # (M, H)

        # ---- attention output proj + residual + LN (fused epilogue) ----------
        attn_out = jnp.dot(ctx, wo_ref[l], preferred_element_type=f32) + bo_ref[l]
        h = layernorm(attn_out + h, ln1g_ref[l], ln1b_ref[l])

        # ---- FFN: matmul+bias+exact GELU, matmul+bias+residual+LN ------------
        ffn = gelu_exact(jnp.dot(h, w1_ref[l], preferred_element_type=f32) + b1_ref[l])
        ffn_out = jnp.dot(ffn, w2_ref[l], preferred_element_type=f32) + b2_ref[l]
        h = layernorm(ffn_out + h, ln2g_ref[l], ln2b_ref[l])

    seq_ref[...] = h.astype(seq_ref.dtype)

    # ---- pooler on the [CLS] rows (row 0 of every sequence) ------------------
    cls = jnp.concatenate([h[bi * seqlen:bi * seqlen + 1, :] for bi in range(bsz)],
                          axis=0)                                    # (B, H)
    pooled = jnp.tanh(jnp.dot(cls, wp_ref[...], preferred_element_type=f32)
                      + bp_ref[...])
    pooled_ref[...] = pooled.astype(pooled_ref.dtype)


# ------------------------------ parameter setup --------------------------------


def init_params(key):
    def normal(key, shape):
        return 0.02 * jax.random.normal(key, shape, dtype=jnp.float32)

    keys = jax.random.split(key, 8 + N_LAYERS)
    params = {
        "word_emb": normal(keys[0], (VOCAB, HIDDEN)),
        "pos_emb": normal(keys[1], (MAX_POS, HIDDEN)),
        "type_emb": normal(keys[2], (TYPE_VOCAB, HIDDEN)),
        "emb_ln_g": jnp.ones((HIDDEN,), jnp.float32),
        "emb_ln_b": jnp.zeros((HIDDEN,), jnp.float32),
        "wp": normal(keys[3], (HIDDEN, HIDDEN)),
        "bp": jnp.zeros((HIDDEN,), jnp.float32),
        "layers": [],
    }
    for l in range(N_LAYERS):
        lk = jax.random.split(keys[8 + l], 6)
        params["layers"].append({
            "wq": normal(lk[0], (HIDDEN, HIDDEN)), "bq": jnp.zeros((HIDDEN,), jnp.float32),
            "wk": normal(lk[1], (HIDDEN, HIDDEN)), "bk": jnp.zeros((HIDDEN,), jnp.float32),
            "wv": normal(lk[2], (HIDDEN, HIDDEN)), "bv": jnp.zeros((HIDDEN,), jnp.float32),
            "wo": normal(lk[3], (HIDDEN, HIDDEN)), "bo": jnp.zeros((HIDDEN,), jnp.float32),
            "ln1_g": jnp.ones((HIDDEN,), jnp.float32), "ln1_b": jnp.zeros((HIDDEN,), jnp.float32),
            "w1": normal(lk[4], (HIDDEN, INTERMEDIATE)), "b1": jnp.zeros((INTERMEDIATE,), jnp.float32),
            "w2": normal(lk[5], (INTERMEDIATE, HIDDEN)), "b2": jnp.zeros((HIDDEN,), jnp.float32),
            "ln2_g": jnp.ones((HIDDEN,), jnp.float32), "ln2_b": jnp.zeros((HIDDEN,), jnp.float32),
        })
    return params


def prepare_fused_params(params):
    """Stack / concatenate per-layer weights so the kernel can index them by layer."""
    L = len(params["layers"])

    def stack(name):
        return jnp.stack([params["layers"][l][name] for l in range(L)])

    fused = {
        "word_emb": params["word_emb"],
        "pos_emb": params["pos_emb"],
        "type_emb": params["type_emb"],
        "emb_ln_g": params["emb_ln_g"].reshape(1, HIDDEN),
        "emb_ln_b": params["emb_ln_b"].reshape(1, HIDDEN),
        # fused Q|K|V projection: (L, H, 3H) / (L, 1, 3H)
        "wqkv": jnp.stack([
            jnp.concatenate([params["layers"][l]["wq"],
                             params["layers"][l]["wk"],
                             params["layers"][l]["wv"]], axis=1) for l in range(L)]),
        "bqkv": jnp.stack([
            jnp.concatenate([params["layers"][l]["bq"],
                             params["layers"][l]["bk"],
                             params["layers"][l]["bv"]])[None, :] for l in range(L)]),
        "wo": stack("wo"),                      # (L, H, H)
        "bo": stack("bo")[:, None, :],          # (L, 1, H)
        "ln1_g": stack("ln1_g")[:, None, :],
        "ln1_b": stack("ln1_b")[:, None, :],
        "w1": stack("w1"),                      # (L, H, I)
        "b1": stack("b1")[:, None, :],          # (L, 1, I)
        "w2": stack("w2"),                      # (L, I, H)
        "b2": stack("b2")[:, None, :],          # (L, 1, H)
        "ln2_g": stack("ln2_g")[:, None, :],
        "ln2_b": stack("ln2_b")[:, None, :],
        "wp": params["wp"],
        "bp": params["bp"].reshape(1, HIDDEN),
    }
    return fused


# ------------------------------- forward pass ----------------------------------


@jax.jit
def bert_encoder_forward(fparams, ids, mask, type_ids):
    """Mirrors BertEncoder.forward: returns (dropout(sequence_output), pooled.unsqueeze(0))."""
    B, S = ids.shape

    # Embedding gathers stay in XLA (glue); everything else runs in one kernel.
    we = fparams["word_emb"][ids]                       # (B, S, H)
    pe = fparams["pos_emb"][jnp.arange(S)]              # (S, H)
    te = fparams["type_emb"][type_ids]                  # (B, S, H)
    emb = (we + pe[None, :, :] + te).reshape(B * S, HIDDEN).astype(jnp.float32)

    # HF-style additive attention mask: 0 where attended, -10000 where masked.
    mask_bias = (1.0 - mask.astype(jnp.float32)) * -10000.0   # (B, S)

    kernel = functools.partial(_encoder_kernel, bsz=B, seqlen=S)
    vmem = pl.BlockSpec(memory_space=pltpu.MemorySpace.VMEM)   # whole array in VMEM
    seq_flat, pooled = pl.pallas_call(
        kernel,
        out_shape=(jax.ShapeDtypeStruct((B * S, HIDDEN), jnp.float32),
                   jax.ShapeDtypeStruct((B, HIDDEN), jnp.float32)),
        in_specs=[vmem] * 18,
        out_specs=(vmem, vmem),
    )(emb, mask_bias,
      fparams["emb_ln_g"], fparams["emb_ln_b"],
      fparams["wqkv"], fparams["bqkv"], fparams["wo"], fparams["bo"],
      fparams["ln1_g"], fparams["ln1_b"],
      fparams["w1"], fparams["b1"], fparams["w2"], fparams["b2"],
      fparams["ln2_g"], fparams["ln2_b"],
      fparams["wp"], fparams["bp"])

    seq_out = seq_flat.reshape(B, S, HIDDEN)            # bert_outputs[0]
    # TODO(synk): nn.Dropout is applied in eval mode here (identity, no RNG mask).
    outputs = seq_out
    dec_hidden = pooled[None, :, :]                     # unsqueeze(0) -> (1, B, H)
    return outputs, dec_hidden


# ------------------------------------ main --------------------------------------

if __name__ == "__main__":
    key = jax.random.PRNGKey(0)
    pkey, ikey, tkey = jax.random.split(key, 3)

    B, S = 2, 8
    params = init_params(pkey)
    fparams = prepare_fused_params(params)

    ids = jax.random.randint(ikey, (B, S), 0, VOCAB, dtype=jnp.int32)
    # mask: first sequence fully valid, second has last 3 tokens padded
    mask = jnp.array([[1] * S, [1] * (S - 3) + [0] * 3], dtype=jnp.int32)
    type_ids = jax.random.randint(tkey, (B, S), 0, TYPE_VOCAB, dtype=jnp.int32)

    outputs, dec_hidden = bert_encoder_forward(fparams, ids, mask, type_ids)
    outputs = jax.block_until_ready(outputs)
    dec_hidden = jax.block_until_ready(dec_hidden)

    assert outputs.shape == (B, S, HIDDEN)
    assert dec_hidden.shape == (1, B, HIDDEN)
    assert bool(jnp.all(jnp.isfinite(outputs))) and bool(jnp.all(jnp.isfinite(dec_hidden)))
    print("KERNEL_OK")
</pallas_src>

<mosaic_0001>
module attributes {stable_mosaic.version = 11 : i64} {
  func.func @_encoder_kernel(%arg0: memref<16x32xf32, #tpu.memory_space<vmem>>, %arg1: memref<2x8xf32, #tpu.memory_space<vmem>>, %arg2: memref<1x32xf32, #tpu.memory_space<vmem>>, %arg3: memref<1x32xf32, #tpu.memory_space<vmem>>, %arg4: memref<2x32x96xf32, #tpu.memory_space<vmem>>, %arg5: memref<2x1x96xf32, #tpu.memory_space<vmem>>, %arg6: memref<2x32x32xf32, #tpu.memory_space<vmem>>, %arg7: memref<2x1x32xf32, #tpu.memory_space<vmem>>, %arg8: memref<2x1x32xf32, #tpu.memory_space<vmem>>, %arg9: memref<2x1x32xf32, #tpu.memory_space<vmem>>, %arg10: memref<2x32x64xf32, #tpu.memory_space<vmem>>, %arg11: memref<2x1x64xf32, #tpu.memory_space<vmem>>, %arg12: memref<2x64x32xf32, #tpu.memory_space<vmem>>, %arg13: memref<2x1x32xf32, #tpu.memory_space<vmem>>, %arg14: memref<2x1x32xf32, #tpu.memory_space<vmem>>, %arg15: memref<2x1x32xf32, #tpu.memory_space<vmem>>, %arg16: memref<32x32xf32, #tpu.memory_space<vmem>>, %arg17: memref<1x32xf32, #tpu.memory_space<vmem>>, %arg18: memref<16x32xf32, #tpu.memory_space<vmem>>, %arg19: memref<2x32xf32, #tpu.memory_space<vmem>>) attributes {dimension_semantics = [], scalar_prefetch = 0 : i64, scratch_operands = 0 : i64, tpu.core_type = #tpu.core_type<tc>} {
    %c0 = arith.constant 0 : index
    %c0_0 = arith.constant 0 : index
    %0 = vector.load %arg1[%c0, %c0_0] : memref<2x8xf32, #tpu.memory_space<vmem>>, vector<2x8xf32>
    %c0_1 = arith.constant 0 : index
    %c0_2 = arith.constant 0 : index
    %1 = vector.load %arg0[%c0_1, %c0_2] : memref<16x32xf32, #tpu.memory_space<vmem>>, vector<16x32xf32>
    %c0_3 = arith.constant 0 : index
    %c0_4 = arith.constant 0 : index
    %2 = vector.load %arg2[%c0_3, %c0_4] : memref<1x32xf32, #tpu.memory_space<vmem>>, vector<1x32xf32>
    %c0_5 = arith.constant 0 : index
    %c0_6 = arith.constant 0 : index
    %3 = vector.load %arg3[%c0_5, %c0_6] : memref<1x32xf32, #tpu.memory_space<vmem>>, vector<1x32xf32>
    %cst = arith.constant dense<0.000000e+00> : vector<16xf32>
    %4 = vector.multi_reduction <add>, %1, %cst [1] : vector<16x32xf32> to vector<16xf32>
    %5 = vector.shape_cast %4 : vector<16xf32> to vector<16x1xf32>
    %cst_7 = arith.constant 3.200000e+01 : f32
    %6 = vector.broadcast %cst_7 : f32 to vector<16x1xf32>
    %7 = arith.divf %5, %6 : vector<16x1xf32>
    %8 = vector.broadcast %7 : vector<16x1xf32> to vector<16x32xf32>
    %9 = arith.subf %1, %8 : vector<16x32xf32>
    %10 = arith.mulf %9, %9 : vector<16x32xf32>
    %cst_8 = arith.constant dense<0.000000e+00> : vector<16xf32>
    %11 = vector.multi_reduction <add>, %10, %cst_8 [1] : vector<16x32xf32> to vector<16xf32>
    %12 = vector.shape_cast %11 : vector<16xf32> to vector<16x1xf32>
    %cst_9 = arith.constant 3.200000e+01 : f32
    %13 = vector.broadcast %cst_9 : f32 to vector<16x1xf32>
    %14 = arith.divf %12, %13 : vector<16x1xf32>
    %15 = vector.broadcast %7 : vector<16x1xf32> to vector<16x32xf32>
    %16 = arith.subf %1, %15 : vector<16x32xf32>
    %cst_10 = arith.constant 9.99999996E-13 : f32
    %17 = vector.broadcast %cst_10 : f32 to vector<16x1xf32>
    %18 = arith.addf %14, %17 : vector<16x1xf32>
    %19 = math.rsqrt %18 : vector<16x1xf32>
    %20 = vector.broadcast %19 : vector<16x1xf32> to vector<16x32xf32>
    %21 = arith.mulf %16, %20 : vector<16x32xf32>
    %22 = vector.broadcast %2 : vector<1x32xf32> to vector<16x32xf32>
    %23 = arith.mulf %21, %22 : vector<16x32xf32>
    %24 = vector.broadcast %3 : vector<1x32xf32> to vector<16x32xf32>
    %25 = arith.addf %23, %24 : vector<16x32xf32>
    %c0_11 = arith.constant 0 : index
    %c0_12 = arith.constant 0 : index
    %c0_13 = arith.constant 0 : index
    %26 = vector.load %arg4[%c0_11, %c0_12, %c0_13] : memref<2x32x96xf32, #tpu.memory_space<vmem>>, vector<1x32x96xf32>
    %27 = vector.shape_cast %26 : vector<1x32x96xf32> to vector<32x96xf32>
    %cst_14 = arith.constant dense<0.000000e+00> : vector<16x96xf32>
    %28 = tpu.matmul %25, %27, %cst_14 {dimension_numbers = #tpu.dot_dimension_numbers<[1], [0], [0], [1], [0, 0, 1, 1], [], []>} : vector<16x32xf32>, vector<32x96xf32>, vector<16x96xf32> -> vector<16x96xf32>
    %c0_15 = arith.constant 0 : index
    %c0_16 = arith.constant 0 : index
    %c0_17 = arith.constant 0 : index
    %29 = vector.load %arg5[%c0_15, %c0_16, %c0_17] : memref<2x1x96xf32, #tpu.memory_space<vmem>>, vector<1x1x96xf32>
    %30 = vector.shape_cast %29 : vector<1x1x96xf32> to vector<1x96xf32>
    %31 = vector.broadcast %30 : vector<1x96xf32> to vector<16x96xf32>
    %32 = arith.addf %28, %31 : vector<16x96xf32>
    %33 = vector.extract_strided_slice %0 {offsets = [0, 0], sizes = [1, 8], strides = [1, 1]} : vector<2x8xf32> to vector<1x8xf32>
    %34 = vector.extract_strided_slice %32 {offsets = [0, 0], sizes = [8, 16], strides = [1, 1]} : vector<16x96xf32> to vector<8x16xf32>
    %35 = vector.extract_strided_slice %32 {offsets = [0, 32], sizes = [8, 16], strides = [1, 1]} : vector<16x96xf32> to vector<8x16xf32>
    %36 = vector.extract_strided_slice %32 {offsets = [0, 64], sizes = [8, 16], strides = [1, 1]} : vector<16x96xf32> to vector<8x16xf32>
    %cst_18 = arith.constant dense<0.000000e+00> : vector<8x8xf32>
    %37 = tpu.matmul %34, %35, %cst_18 {dimension_numbers = #tpu.dot_dimension_numbers<[1], [1], [0], [0], [0, 0, 1, 0], [], []>} : vector<8x16xf32>, vector<8x16xf32>, vector<8x8xf32> -> vector<8x8xf32>
    %cst_19 = arith.constant 2.500000e-01 : f32
    %38 = vector.broadcast %cst_19 : f32 to vector<8x8xf32>
    %39 = arith.mulf %37, %38 : vector<8x8xf32>
    %40 = vector.broadcast %33 : vector<1x8xf32> to vector<8x8xf32>
    %41 = arith.addf %39, %40 : vector<8x8xf32>
    %cst_20 = arith.constant dense<0xFF800000> : vector<8xf32>
    %42 = vector.multi_reduction <maximumf>, %41, %cst_20 [1] : vector<8x8xf32> to vector<8xf32>
    %43 = vector.shape_cast %42 : vector<8xf32> to vector<8x1xf32>
    %44 = vector.broadcast %43 : vector<8x1xf32> to vector<8x8xf32>
    %45 = arith.subf %41, %44 : vector<8x8xf32>
    %46 = math.exp %45 : vector<8x8xf32>
    %cst_21 = arith.constant dense<0.000000e+00> : vector<8xf32>
    %47 = vector.multi_reduction <add>, %46, %cst_21 [1] : vector<8x8xf32> to vector<8xf32>
    %48 = vector.shape_cast %47 : vector<8xf32> to vector<8x1xf32>
    %49 = vector.broadcast %48 : vector<8x1xf32> to vector<8x8xf32>
    %50 = arith.divf %46, %49 : vector<8x8xf32>
    %cst_22 = arith.constant dense<0.000000e+00> : vector<8x16xf32>
    %51 = tpu.matmul %50, %36, %cst_22 {dimension_numbers = #tpu.dot_dimension_numbers<[1], [0], [0], [1], [0, 0, 1, 1], [], []>} : vector<8x8xf32>, vector<8x16xf32>, vector<8x16xf32> -> vector<8x16xf32>
    %52 = vector.extract_strided_slice %32 {offsets = [0, 16], sizes = [8, 16], strides = [1, 1]} : vector<16x96xf32> to vector<8x16xf32>
    %53 = vector.extract_strided_slice %32 {offsets = [0, 48], sizes = [8, 16], strides = [1, 1]} : vector<16x96xf32> to vector<8x16xf32>
    %54 = vector.extract_strided_slice %32 {offsets = [0, 80], sizes = [8, 16], strides = [1, 1]} : vector<16x96xf32> to vector<8x16xf32>
    %cst_23 = arith.constant dense<0.000000e+00> : vector<8x8xf32>
    %55 = tpu.matmul %52, %53, %cst_23 {dimension_numbers = #tpu.dot_dimension_numbers<[1], [1], [0], [0], [0, 0, 1, 0], [], []>} : vector<8x16xf32>, vector<8x16xf32>, vector<8x8xf32> -> vector<8x8xf32>
    %cst_24 = arith.constant 2.500000e-01 : f32
    %56 = vector.broadcast %cst_24 : f32 to vector<8x8xf32>
    %57 = arith.mulf %55, %56 : vector<8x8xf32>
    %58 = vector.broadcast %33 : vector<1x8xf32> to vector<8x8xf32>
    %59 = arith.addf %57, %58 : vector<8x8xf32>
    %cst_25 = arith.constant dense<0xFF800000> : vector<8xf32>
    %60 = vector.multi_reduction <maximumf>, %59, %cst_25 [1] : vector<8x8xf32> to vector<8xf32>
    %61 = vector.shape_cast %60 : vector<8xf32> to vector<8x1xf32>
    %62 = vector.broadcast %61 : vector<8x1xf32> to vector<8x8xf32>
    %63 = arith.subf %59, %62 : vector<8x8xf32>
    %64 = math.exp %63 : vector<8x8xf32>
    %cst_26 = arith.constant dense<0.000000e+00> : vector<8xf32>
    %65 = vector.multi_reduction <add>, %64, %cst_26 [1] : vector<8x8xf32> to vector<8xf32>
    %66 = vector.shape_cast %65 : vector<8xf32> to vector<8x1xf32>
    %67 = vector.broadcast %66 : vector<8x1xf32> to vector<8x8xf32>
    %68 = arith.divf %64, %67 : vector<8x8xf32>
    %cst_27 = arith.constant dense<0.000000e+00> : vector<8x16xf32>
    %69 = tpu.matmul %68, %54, %cst_27 {dimension_numbers = #tpu.dot_dimension_numbers<[1], [0], [0], [1], [0, 0, 1, 1], [], []>} : vector<8x8xf32>, vector<8x16xf32>, vector<8x16xf32> -> vector<8x16xf32>
    %70 = tpu.concatenate %51, %69 in 1 : vector<8x16xf32>, vector<8x16xf32> -> vector<8x32xf32>
    %71 = vector.extract_strided_slice %0 {offsets = [1, 0], sizes = [1, 8], strides = [1, 1]} : vector<2x8xf32> to vector<1x8xf32>
    %72 = vector.extract_strided_slice %32 {offsets = [8, 0], sizes = [8, 16], strides = [1, 1]} : vector<16x96xf32> to vector<8x16xf32>
    %73 = vector.extract_strided_slice %32 {offsets = [8, 32], sizes = [8, 16], strides = [1, 1]} : vector<16x96xf32> to vector<8x16xf32>
    %74 = vector.extract_strided_slice %32 {offsets = [8, 64], sizes = [8, 16], strides = [1, 1]} : vector<16x96xf32> to vector<8x16xf32>
    %cst_28 = arith.constant dense<0.000000e+00> : vector<8x8xf32>
    %75 = tpu.matmul %72, %73, %cst_28 {dimension_numbers = #tpu.dot_dimension_numbers<[1], [1], [0], [0], [0, 0, 1, 0], [], []>} : vector<8x16xf32>, vector<8x16xf32>, vector<8x8xf32> -> vector<8x8xf32>
    %cst_29 = arith.constant 2.500000e-01 : f32
    %76 = vector.broadcast %cst_29 : f32 to vector<8x8xf32>
    %77 = arith.mulf %75, %76 : vector<8x8xf32>
    %78 = vector.broadcast %71 : vector<1x8xf32> to vector<8x8xf32>
    %79 = arith.addf %77, %78 : vector<8x8xf32>
    %cst_30 = arith.constant dense<0xFF800000> : vector<8xf32>
    %80 = vector.multi_reduction <maximumf>, %79, %cst_30 [1] : vector<8x8xf32> to vector<8xf32>
    %81 = vector.shape_cast %80 : vector<8xf32> to vector<8x1xf32>
    %82 = vector.broadcast %81 : vector<8x1xf32> to vector<8x8xf32>
    %83 = arith.subf %79, %82 : vector<8x8xf32>
    %84 = math.exp %83 : vector<8x8xf32>
    %cst_31 = arith.constant dense<0.000000e+00> : vector<8xf32>
    %85 = vector.multi_reduction <add>, %84, %cst_31 [1] : vector<8x8xf32> to vector<8xf32>
    %86 = vector.shape_cast %85 : vector<8xf32> to vector<8x1xf32>
    %87 = vector.broadcast %86 : vector<8x1xf32> to vector<8x8xf32>
    %88 = arith.divf %84, %87 : vector<8x8xf32>
    %cst_32 = arith.constant dense<0.000000e+00> : vector<8x16xf32>
    %89 = tpu.matmul %88, %74, %cst_32 {dimension_numbers = #tpu.dot_dimension_numbers<[1], [0], [0], [1], [0, 0, 1, 1], [], []>} : vector<8x8xf32>, vector<8x16xf32>, vector<8x16xf32> -> vector<8x16xf32>
    %90 = vector.extract_strided_slice %32 {offsets = [8, 16], sizes = [8, 16], strides = [1, 1]} : vector<16x96xf32> to vector<8x16xf32>
    %91 = vector.extract_strided_slice %32 {offsets = [8, 48], sizes = [8, 16], strides = [1, 1]} : vector<16x96xf32> to vector<8x16xf32>
    %92 = vector.extract_strided_slice %32 {offsets = [8, 80], sizes = [8, 16], strides = [1, 1]} : vector<16x96xf32> to vector<8x16xf32>
    %cst_33 = arith.constant dense<0.000000e+00> : vector<8x8xf32>
    %93 = tpu.matmul %90, %91, %cst_33 {dimension_numbers = #tpu.dot_dimension_numbers<[1], [1], [0], [0], [0, 0, 1, 0], [], []>} : vector<8x16xf32>, vector<8x16xf32>, vector<8x8xf32> -> vector<8x8xf32>
    %cst_34 = arith.constant 2.500000e-01 : f32
    %94 = vector.broadcast %cst_34 : f32 to vector<8x8xf32>
    %95 = arith.mulf %93, %94 : vector<8x8xf32>
    %96 = vector.broadcast %71 : vector<1x8xf32> to vector<8x8xf32>
    %97 = arith.addf %95, %96 : vector<8x8xf32>
    %cst_35 = arith.constant dense<0xFF800000> : vector<8xf32>
    %98 = vector.multi_reduction <maximumf>, %97, %cst_35 [1] : vector<8x8xf32> to vector<8xf32>
    %99 = vector.shape_cast %98 : vector<8xf32> to vector<8x1xf32>
    %100 = vector.broadcast %99 : vector<8x1xf32> to vector<8x8xf32>
    %101 = arith.subf %97, %100 : vector<8x8xf32>
    %102 = math.exp %101 : vector<8x8xf32>
    %cst_36 = arith.constant dense<0.000000e+00> : vector<8xf32>
    %103 = vector.multi_reduction <add>, %102, %cst_36 [1] : vector<8x8xf32> to vector<8xf32>
    %104 = vector.shape_cast %103 : vector<8xf32> to vector<8x1xf32>
    %105 = vector.broadcast %104 : vector<8x1xf32> to vector<8x8xf32>
    %106 = arith.divf %102, %105 : vector<8x8xf32>
    %cst_37 = arith.constant dense<0.000000e+00> : vector<8x16xf32>
    %107 = tpu.matmul %106, %92, %cst_37 {dimension_numbers = #tpu.dot_dimension_numbers<[1], [0], [0], [1], [0, 0, 1, 1], [], []>} : vector<8x8xf32>, vector<8x16xf32>, vector<8x16xf32> -> vector<8x16xf32>
    %108 = tpu.concatenate %89, %107 in 1 : vector<8x16xf32>, vector<8x16xf32> -> vector<8x32xf32>
    %109 = tpu.concatenate %70, %108 in 0 : vector<8x32xf32>, vector<8x32xf32> -> vector<16x32xf32>
    %c0_38 = arith.constant 0 : index
    %c0_39 = arith.constant 0 : index
    %c0_40 = arith.constant 0 : index
    %110 = vector.load %arg6[%c0_38, %c0_39, %c0_40] : memref<2x32x32xf32, #tpu.memory_space<vmem>>, vector<1x32x32xf32>
    %111 = vector.shape_cast %110 : vector<1x32x32xf32> to vector<32x32xf32>
    %cst_41 = arith.constant dense<0.000000e+00> : vector<16x32xf32>
    %112 = tpu.matmul %109, %111, %cst_41 {dimension_numbers = #tpu.dot_dimension_numbers<[1], [0], [0], [1], [0, 0, 1, 1], [], []>} : vector<16x32xf32>, vector<32x32xf32>, vector<16x32xf32> -> vector<16x32xf32>
    %c0_42 = arith.constant 0 : index
    %c0_43 = arith.constant 0 : index
    %c0_44 = arith.constant 0 : index
    %113 = vector.load %arg7[%c0_42, %c0_43, %c0_44] : memref<2x1x32xf32, #tpu.memory_space<vmem>>, vector<1x1x32xf32>
    %114 = vector.shape_cast %113 : vector<1x1x32xf32> to vector<1x32xf32>
    %115 = vector.broadcast %114 : vector<1x32xf32> to vector<16x32xf32>
    %116 = arith.addf %112, %115 : vector<16x32xf32>
    %117 = arith.addf %116, %25 : vector<16x32xf32>
    %c0_45 = arith.constant 0 : index
    %c0_46 = arith.constant 0 : index
    %c0_47 = arith.constant 0 : index
    %118 = vector.load %arg8[%c0_45, %c0_46, %c0_47] : memref<2x1x32xf32, #tpu.memory_space<vmem>>, vector<1x1x32xf32>
    %119 = vector.shape_cast %118 : vector<1x1x32xf32> to vector<1x32xf32>
    %c0_48 = arith.constant 0 : index
    %c0_49 = arith.constant 0 : index
    %c0_50 = arith.constant 0 : index
    %120 = vector.load %arg9[%c0_48, %c0_49, %c0_50] : memref<2x1x32xf32, #tpu.memory_space<vmem>>, vector<1x1x32xf32>
    %121 = vector.shape_cast %120 : vector<1x1x32xf32> to vector<1x32xf32>
    %cst_51 = arith.constant dense<0.000000e+00> : vector<16xf32>
    %122 = vector.multi_reduction <add>, %117, %cst_51 [1] : vector<16x32xf32> to vector<16xf32>
    %123 = vector.shape_cast %122 : vector<16xf32> to vector<16x1xf32>
    %cst_52 = arith.constant 3.200000e+01 : f32
    %124 = vector.broadcast %cst_52 : f32 to vector<16x1xf32>
    %125 = arith.divf %123, %124 : vector<16x1xf32>
    %126 = vector.broadcast %125 : vector<16x1xf32> to vector<16x32xf32>
    %127 = arith.subf %117, %126 : vector<16x32xf32>
    %128 = arith.mulf %127, %127 : vector<16x32xf32>
    %cst_53 = arith.constant dense<0.000000e+00> : vector<16xf32>
    %129 = vector.multi_reduction <add>, %128, %cst_53 [1] : vector<16x32xf32> to vector<16xf32>
    %130 = vector.shape_cast %129 : vector<16xf32> to vector<16x1xf32>
    %cst_54 = arith.constant 3.200000e+01 : f32
    %131 = vector.broadcast %cst_54 : f32 to vector<16x1xf32>
    %132 = arith.divf %130, %131 : vector<16x1xf32>
    %133 = vector.broadcast %125 : vector<16x1xf32> to vector<16x32xf32>
    %134 = arith.subf %117, %133 : vector<16x32xf32>
    %cst_55 = arith.constant 9.99999996E-13 : f32
    %135 = vector.broadcast %cst_55 : f32 to vector<16x1xf32>
    %136 = arith.addf %132, %135 : vector<16x1xf32>
    %137 = math.rsqrt %136 : vector<16x1xf32>
    %138 = vector.broadcast %137 : vector<16x1xf32> to vector<16x32xf32>
    %139 = arith.mulf %134, %138 : vector<16x32xf32>
    %140 = vector.broadcast %119 : vector<1x32xf32> to vector<16x32xf32>
    %141 = arith.mulf %139, %140 : vector<16x32xf32>
    %142 = vector.broadcast %121 : vector<1x32xf32> to vector<16x32xf32>
    %143 = arith.addf %141, %142 : vector<16x32xf32>
    %c0_56 = arith.constant 0 : index
    %c0_57 = arith.constant 0 : index
    %c0_58 = arith.constant 0 : index
    %144 = vector.load %arg10[%c0_56, %c0_57, %c0_58] : memref<2x32x64xf32, #tpu.memory_space<vmem>>, vector<1x32x64xf32>
    %145 = vector.shape_cast %144 : vector<1x32x64xf32> to vector<32x64xf32>
    %cst_59 = arith.constant dense<0.000000e+00> : vector<16x64xf32>
    %146 = tpu.matmul %143, %145, %cst_59 {dimension_numbers = #tpu.dot_dimension_numbers<[1], [0], [0], [1], [0, 0, 1, 1], [], []>} : vector<16x32xf32>, vector<32x64xf32>, vector<16x64xf32> -> vector<16x64xf32>
    %c0_60 = arith.constant 0 : index
    %c0_61 = arith.constant 0 : index
    %c0_62 = arith.constant 0 : index
    %147 = vector.load %arg11[%c0_60, %c0_61, %c0_62] : memref<2x1x64xf32, #tpu.memory_space<vmem>>, vector<1x1x64xf32>
    %148 = vector.shape_cast %147 : vector<1x1x64xf32> to vector<1x64xf32>
    %149 = vector.broadcast %148 : vector<1x64xf32> to vector<16x64xf32>
    %150 = arith.addf %146, %149 : vector<16x64xf32>
    %cst_63 = arith.constant 5.000000e-01 : f32
    %151 = vector.broadcast %cst_63 : f32 to vector<16x64xf32>
    %152 = arith.mulf %151, %150 : vector<16x64xf32>
    %cst_64 = arith.constant 0.707106769 : f32
    %153 = vector.broadcast %cst_64 : f32 to vector<16x64xf32>
    %154 = arith.mulf %150, %153 : vector<16x64xf32>
    %cst_65 = arith.constant 0.000000e+00 : f32
    %155 = vector.broadcast %cst_65 : f32 to vector<16x64xf32>
    %156 = arith.cmpf oge, %154, %155 : vector<16x64xf32>
    %cst_66 = arith.constant 1.000000e+00 : f32
    %cst_67 = arith.constant -1.000000e+00 : f32
    %157 = vector.broadcast %cst_66 : f32 to vector<16x64xf32>
    %158 = vector.broadcast %cst_67 : f32 to vector<16x64xf32>
    %159 = arith.select %156, %157, %158 : vector<16x64xi1>, vector<16x64xf32>
    %160 = math.absf %154 : vector<16x64xf32>
    %cst_68 = arith.constant 0.327591091 : f32
    %161 = vector.broadcast %cst_68 : f32 to vector<16x64xf32>
    %162 = arith.mulf %161, %160 : vector<16x64xf32>
    %cst_69 = arith.constant 1.000000e+00 : f32
    %163 = vector.broadcast %cst_69 : f32 to vector<16x64xf32>
    %164 = arith.addf %163, %162 : vector<16x64xf32>
    %cst_70 = arith.constant 1.000000e+00 : f32
    %165 = vector.broadcast %cst_70 : f32 to vector<16x64xf32>
    %166 = arith.divf %165, %164 : vector<16x64xf32>
    %cst_71 = arith.constant 1.06140542 : f32
    %167 = vector.broadcast %cst_71 : f32 to vector<16x64xf32>
    %168 = arith.mulf %167, %166 : vector<16x64xf32>
    %cst_72 = arith.constant -1.45315206 : f32
    %169 = vector.broadcast %cst_72 : f32 to vector<16x64xf32>
    %170 = arith.addf %168, %169 : vector<16x64xf32>
    %171 = arith.mulf %170, %166 : vector<16x64xf32>
    %cst_73 = arith.constant 1.42141378 : f32
    %172 = vector.broadcast %cst_73 : f32 to vector<16x64xf32>
    %173 = arith.addf %171, %172 : vector<16x64xf32>
    %174 = arith.mulf %173, %166 : vector<16x64xf32>
    %cst_74 = arith.constant -0.284496725 : f32
    %175 = vector.broadcast %cst_74 : f32 to vector<16x64xf32>
    %176 = arith.addf %174, %175 : vector<16x64xf32>
    %177 = arith.mulf %176, %166 : vector<16x64xf32>
    %cst_75 = arith.constant 0.254829586 : f32
    %178 = vector.broadcast %cst_75 : f32 to vector<16x64xf32>
    %179 = arith.addf %177, %178 : vector<16x64xf32>
    %180 = arith.mulf %179, %166 : vector<16x64xf32>
    %cst_76 = arith.constant 0.000000e+00 : f32
    %181 = vector.broadcast %cst_76 : f32 to vector<16x64xf32>
    %182 = arith.subf %181, %160 : vector<16x64xf32>
    %183 = arith.mulf %182, %160 : vector<16x64xf32>
    %184 = math.exp %183 : vector<16x64xf32>
    %185 = arith.mulf %180, %184 : vector<16x64xf32>
    %cst_77 = arith.constant 1.000000e+00 : f32
    %186 = vector.broadcast %cst_77 : f32 to vector<16x64xf32>
    %187 = arith.subf %186, %185 : vector<16x64xf32>
    %188 = arith.mulf %159, %187 : vector<16x64xf32>
    %cst_78 = arith.constant 1.000000e+00 : f32
    %189 = vector.broadcast %cst_78 : f32 to vector<16x64xf32>
    %190 = arith.addf %189, %188 : vector<16x64xf32>
    %191 = arith.mulf %152, %190 : vector<16x64xf32>
    %c0_79 = arith.constant 0 : index
    %c0_80 = arith.constant 0 : index
    %c0_81 = arith.constant 0 : index
    %192 = vector.load %arg12[%c0_79, %c0_80, %c0_81] : memref<2x64x32xf32, #tpu.memory_space<vmem>>, vector<1x64x32xf32>
    %193 = vector.shape_cast %192 : vector<1x64x32xf32> to vector<64x32xf32>
    %cst_82 = arith.constant dense<0.000000e+00> : vector<16x32xf32>
    %194 = tpu.matmul %191, %193, %cst_82 {dimension_numbers = #tpu.dot_dimension_numbers<[1], [0], [0], [1], [0, 0, 1, 1], [], []>} : vector<16x64xf32>, vector<64x32xf32>, vector<16x32xf32> -> vector<16x32xf32>
    %c0_83 = arith.constant 0 : index
    %c0_84 = arith.constant 0 : index
    %c0_85 = arith.constant 0 : index
    %195 = vector.load %arg13[%c0_83, %c0_84, %c0_85] : memref<2x1x32xf32, #tpu.memory_space<vmem>>, vector<1x1x32xf32>
    %196 = vector.shape_cast %195 : vector<1x1x32xf32> to vector<1x32xf32>
    %197 = vector.broadcast %196 : vector<1x32xf32> to vector<16x32xf32>
    %198 = arith.addf %194, %197 : vector<16x32xf32>
    %199 = arith.addf %198, %143 : vector<16x32xf32>
    %c0_86 = arith.constant 0 : index
    %c0_87 = arith.constant 0 : index
    %c0_88 = arith.constant 0 : index
    %200 = vector.load %arg14[%c0_86, %c0_87, %c0_88] : memref<2x1x32xf32, #tpu.memory_space<vmem>>, vector<1x1x32xf32>
    %201 = vector.shape_cast %200 : vector<1x1x32xf32> to vector<1x32xf32>
    %c0_89 = arith.constant 0 : index
    %c0_90 = arith.constant 0 : index
    %c0_91 = arith.constant 0 : index
    %202 = vector.load %arg15[%c0_89, %c0_90, %c0_91] : memref<2x1x32xf32, #tpu.memory_space<vmem>>, vector<1x1x32xf32>
    %203 = vector.shape_cast %202 : vector<1x1x32xf32> to vector<1x32xf32>
    %cst_92 = arith.constant dense<0.000000e+00> : vector<16xf32>
    %204 = vector.multi_reduction <add>, %199, %cst_92 [1] : vector<16x32xf32> to vector<16xf32>
    %205 = vector.shape_cast %204 : vector<16xf32> to vector<16x1xf32>
    %cst_93 = arith.constant 3.200000e+01 : f32
    %206 = vector.broadcast %cst_93 : f32 to vector<16x1xf32>
    %207 = arith.divf %205, %206 : vector<16x1xf32>
    %208 = vector.broadcast %207 : vector<16x1xf32> to vector<16x32xf32>
    %209 = arith.subf %199, %208 : vector<16x32xf32>
    %210 = arith.mulf %209, %209 : vector<16x32xf32>
    %cst_94 = arith.constant dense<0.000000e+00> : vector<16xf32>
    %211 = vector.multi_reduction <add>, %210, %cst_94 [1] : vector<16x32xf32> to vector<16xf32>
    %212 = vector.shape_cast %211 : vector<16xf32> to vector<16x1xf32>
    %cst_95 = arith.constant 3.200000e+01 : f32
    %213 = vector.broadcast %cst_95 : f32 to vector<16x1xf32>
    %214 = arith.divf %212, %213 : vector<16x1xf32>
    %215 = vector.broadcast %207 : vector<16x1xf32> to vector<16x32xf32>
    %216 = arith.subf %199, %215 : vector<16x32xf32>
    %cst_96 = arith.constant 9.99999996E-13 : f32
    %217 = vector.broadcast %cst_96 : f32 to vector<16x1xf32>
    %218 = arith.addf %214, %217 : vector<16x1xf32>
    %219 = math.rsqrt %218 : vector<16x1xf32>
    %220 = vector.broadcast %219 : vector<16x1xf32> to vector<16x32xf32>
    %221 = arith.mulf %216, %220 : vector<16x32xf32>
    %222 = vector.broadcast %201 : vector<1x32xf32> to vector<16x32xf32>
    %223 = arith.mulf %221, %222 : vector<16x32xf32>
    %224 = vector.broadcast %203 : vector<1x32xf32> to vector<16x32xf32>
    %225 = arith.addf %223, %224 : vector<16x32xf32>
    %c1 = arith.constant 1 : index
    %c0_97 = arith.constant 0 : index
    %c0_98 = arith.constant 0 : index
    %226 = vector.load %arg4[%c1, %c0_97, %c0_98] : memref<2x32x96xf32, #tpu.memory_space<vmem>>, vector<1x32x96xf32>
    %227 = vector.shape_cast %226 : vector<1x32x96xf32> to vector<32x96xf32>
    %cst_99 = arith.constant dense<0.000000e+00> : vector<16x96xf32>
    %228 = tpu.matmul %225, %227, %cst_99 {dimension_numbers = #tpu.dot_dimension_numbers<[1], [0], [0], [1], [0, 0, 1, 1], [], []>} : vector<16x32xf32>, vector<32x96xf32>, vector<16x96xf32> -> vector<16x96xf32>
    %c1_100 = arith.constant 1 : index
    %c0_101 = arith.constant 0 : index
    %c0_102 = arith.constant 0 : index
    %229 = vector.load %arg5[%c1_100, %c0_101, %c0_102] : memref<2x1x96xf32, #tpu.memory_space<vmem>>, vector<1x1x96xf32>
    %230 = vector.shape_cast %229 : vector<1x1x96xf32> to vector<1x96xf32>
    %231 = vector.broadcast %230 : vector<1x96xf32> to vector<16x96xf32>
    %232 = arith.addf %228, %231 : vector<16x96xf32>
    %233 = vector.extract_strided_slice %0 {offsets = [0, 0], sizes = [1, 8], strides = [1, 1]} : vector<2x8xf32> to vector<1x8xf32>
    %234 = vector.extract_strided_slice %232 {offsets = [0, 0], sizes = [8, 16], strides = [1, 1]} : vector<16x96xf32> to vector<8x16xf32>
    %235 = vector.extract_strided_slice %232 {offsets = [0, 32], sizes = [8, 16], strides = [1, 1]} : vector<16x96xf32> to vector<8x16xf32>
    %236 = vector.extract_strided_slice %232 {offsets = [0, 64], sizes = [8, 16], strides = [1, 1]} : vector<16x96xf32> to vector<8x16xf32>
    %cst_103 = arith.constant dense<0.000000e+00> : vector<8x8xf32>
    %237 = tpu.matmul %234, %235, %cst_103 {dimension_numbers = #tpu.dot_dimension_numbers<[1], [1], [0], [0], [0, 0, 1, 0], [], []>} : vector<8x16xf32>, vector<8x16xf32>, vector<8x8xf32> -> vector<8x8xf32>
    %cst_104 = arith.constant 2.500000e-01 : f32
    %238 = vector.broadcast %cst_104 : f32 to vector<8x8xf32>
    %239 = arith.mulf %237, %238 : vector<8x8xf32>
    %240 = vector.broadcast %233 : vector<1x8xf32> to vector<8x8xf32>
    %241 = arith.addf %239, %240 : vector<8x8xf32>
    %cst_105 = arith.constant dense<0xFF800000> : vector<8xf32>
    %242 = vector.multi_reduction <maximumf>, %241, %cst_105 [1] : vector<8x8xf32> to vector<8xf32>
    %243 = vector.shape_cast %242 : vector<8xf32> to vector<8x1xf32>
    %244 = vector.broadcast %243 : vector<8x1xf32> to vector<8x8xf32>
    %245 = arith.subf %241, %244 : vector<8x8xf32>
    %246 = math.exp %245 : vector<8x8xf32>
    %cst_106 = arith.constant dense<0.000000e+00> : vector<8xf32>
    %247 = vector.multi_reduction <add>, %246, %cst_106 [1] : vector<8x8xf32> to vector<8xf32>
    %248 = vector.shape_cast %247 : vector<8xf32> to vector<8x1xf32>
    %249 = vector.broadcast %248 : vector<8x1xf32> to vector<8x8xf32>
    %250 = arith.divf %246, %249 : vector<8x8xf32>
    %cst_107 = arith.constant dense<0.000000e+00> : vector<8x16xf32>
    %251 = tpu.matmul %250, %236, %cst_107 {dimension_numbers = #tpu.dot_dimension_numbers<[1], [0], [0], [1], [0, 0, 1, 1], [], []>} : vector<8x8xf32>, vector<8x16xf32>, vector<8x16xf32> -> vector<8x16xf32>
    %252 = vector.extract_strided_slice %232 {offsets = [0, 16], sizes = [8, 16], strides = [1, 1]} : vector<16x96xf32> to vector<8x16xf32>
    %253 = vector.extract_strided_slice %232 {offsets = [0, 48], sizes = [8, 16], strides = [1, 1]} : vector<16x96xf32> to vector<8x16xf32>
    %254 = vector.extract_strided_slice %232 {offsets = [0, 80], sizes = [8, 16], strides = [1, 1]} : vector<16x96xf32> to vector<8x16xf32>
    %cst_108 = arith.constant dense<0.000000e+00> : vector<8x8xf32>
    %255 = tpu.matmul %252, %253, %cst_108 {dimension_numbers = #tpu.dot_dimension_numbers<[1], [1], [0], [0], [0, 0, 1, 0], [], []>} : vector<8x16xf32>, vector<8x16xf32>, vector<8x8xf32> -> vector<8x8xf32>
    %cst_109 = arith.constant 2.500000e-01 : f32
    %256 = vector.broadcast %cst_109 : f32 to vector<8x8xf32>
    %257 = arith.mulf %255, %256 : vector<8x8xf32>
    %258 = vector.broadcast %233 : vector<1x8xf32> to vector<8x8xf32>
    %259 = arith.addf %257, %258 : vector<8x8xf32>
    %cst_110 = arith.constant dense<0xFF800000> : vector<8xf32>
    %260 = vector.multi_reduction <maximumf>, %259, %cst_110 [1] : vector<8x8xf32> to vector<8xf32>
    %261 = vector.shape_cast %260 : vector<8xf32> to vector<8x1xf32>
    %262 = vector.broadcast %261 : vector<8x1xf32> to vector<8x8xf32>
    %263 = arith.subf %259, %262 : vector<8x8xf32>
    %264 = math.exp %263 : vector<8x8xf32>
    %cst_111 = arith.constant dense<0.000000e+00> : vector<8xf32>
    %265 = vector.multi_reduction <add>, %264, %cst_111 [1] : vector<8x8xf32> to vector<8xf32>
    %266 = vector.shape_cast %265 : vector<8xf32> to vector<8x1xf32>
    %267 = vector.broadcast %266 : vector<8x1xf32> to vector<8x8xf32>
    %268 = arith.divf %264, %267 : vector<8x8xf32>
    %cst_112 = arith.constant dense<0.000000e+00> : vector<8x16xf32>
    %269 = tpu.matmul %268, %254, %cst_112 {dimension_numbers = #tpu.dot_dimension_numbers<[1], [0], [0], [1], [0, 0, 1, 1], [], []>} : vector<8x8xf32>, vector<8x16xf32>, vector<8x16xf32> -> vector<8x16xf32>
    %270 = tpu.concatenate %251, %269 in 1 : vector<8x16xf32>, vector<8x16xf32> -> vector<8x32xf32>
    %271 = vector.extract_strided_slice %0 {offsets = [1, 0], sizes = [1, 8], strides = [1, 1]} : vector<2x8xf32> to vector<1x8xf32>
    %272 = vector.extract_strided_slice %232 {offsets = [8, 0], sizes = [8, 16], strides = [1, 1]} : vector<16x96xf32> to vector<8x16xf32>
    %273 = vector.extract_strided_slice %232 {offsets = [8, 32], sizes = [8, 16], strides = [1, 1]} : vector<16x96xf32> to vector<8x16xf32>
    %274 = vector.extract_strided_slice %232 {offsets = [8, 64], sizes = [8, 16], strides = [1, 1]} : vector<16x96xf32> to vector<8x16xf32>
    %cst_113 = arith.constant dense<0.000000e+00> : vector<8x8xf32>
    %275 = tpu.matmul %272, %273, %cst_113 {dimension_numbers = #tpu.dot_dimension_numbers<[1], [1], [0], [0], [0, 0, 1, 0], [], []>} : vector<8x16xf32>, vector<8x16xf32>, vector<8x8xf32> -> vector<8x8xf32>
    %cst_114 = arith.constant 2.500000e-01 : f32
    %276 = vector.broadcast %cst_114 : f32 to vector<8x8xf32>
    %277 = arith.mulf %275, %276 : vector<8x8xf32>
    %278 = vector.broadcast %271 : vector<1x8xf32> to vector<8x8xf32>
    %279 = arith.addf %277, %278 : vector<8x8xf32>
    %cst_115 = arith.constant dense<0xFF800000> : vector<8xf32>
    %280 = vector.multi_reduction <maximumf>, %279, %cst_115 [1] : vector<8x8xf32> to vector<8xf32>
    %281 = vector.shape_cast %280 : vector<8xf32> to vector<8x1xf32>
    %282 = vector.broadcast %281 : vector<8x1xf32> to vector<8x8xf32>
    %283 = arith.subf %279, %282 : vector<8x8xf32>
    %284 = math.exp %283 : vector<8x8xf32>
    %cst_116 = arith.constant dense<0.000000e+00> : vector<8xf32>
    %285 = vector.multi_reduction <add>, %284, %cst_116 [1] : vector<8x8xf32> to vector<8xf32>
    %286 = vector.shape_cast %285 : vector<8xf32> to vector<8x1xf32>
    %287 = vector.broadcast %286 : vector<8x1xf32> to vector<8x8xf32>
    %288 = arith.divf %284, %287 : vector<8x8xf32>
    %cst_117 = arith.constant dense<0.000000e+00> : vector<8x16xf32>
    %289 = tpu.matmul %288, %274, %cst_117 {dimension_numbers = #tpu.dot_dimension_numbers<[1], [0], [0], [1], [0, 0, 1, 1], [], []>} : vector<8x8xf32>, vector<8x16xf32>, vector<8x16xf32> -> vector<8x16xf32>
    %290 = vector.extract_strided_slice %232 {offsets = [8, 16], sizes = [8, 16], strides = [1, 1]} : vector<16x96xf32> to vector<8x16xf32>
    %291 = vector.extract_strided_slice %232 {offsets = [8, 48], sizes = [8, 16], strides = [1, 1]} : vector<16x96xf32> to vector<8x16xf32>
    %292 = vector.extract_strided_slice %232 {offsets = [8, 80], sizes = [8, 16], strides = [1, 1]} : vector<16x96xf32> to vector<8x16xf32>
    %cst_118 = arith.constant dense<0.000000e+00> : vector<8x8xf32>
    %293 = tpu.matmul %290, %291, %cst_118 {dimension_numbers = #tpu.dot_dimension_numbers<[1], [1], [0], [0], [0, 0, 1, 0], [], []>} : vector<8x16xf32>, vector<8x16xf32>, vector<8x8xf32> -> vector<8x8xf32>
    %cst_119 = arith.constant 2.500000e-01 : f32
    %294 = vector.broadcast %cst_119 : f32 to vector<8x8xf32>
    %295 = arith.mulf %293, %294 : vector<8x8xf32>
    %296 = vector.broadcast %271 : vector<1x8xf32> to vector<8x8xf32>
    %297 = arith.addf %295, %296 : vector<8x8xf32>
    %cst_120 = arith.constant dense<0xFF800000> : vector<8xf32>
    %298 = vector.multi_reduction <maximumf>, %297, %cst_120 [1] : vector<8x8xf32> to vector<8xf32>
    %299 = vector.shape_cast %298 : vector<8xf32> to vector<8x1xf32>
    %300 = vector.broadcast %299 : vector<8x1xf32> to vector<8x8xf32>
    %301 = arith.subf %297, %300 : vector<8x8xf32>
    %302 = math.exp %301 : vector<8x8xf32>
    %cst_121 = arith.constant dense<0.000000e+00> : vector<8xf32>
    %303 = vector.multi_reduction <add>, %302, %cst_121 [1] : vector<8x8xf32> to vector<8xf32>
    %304 = vector.shape_cast %303 : vector<8xf32> to vector<8x1xf32>
    %305 = vector.broadcast %304 : vector<8x1xf32> to vector<8x8xf32>
    %306 = arith.divf %302, %305 : vector<8x8xf32>
    %cst_122 = arith.constant dense<0.000000e+00> : vector<8x16xf32>
    %307 = tpu.matmul %306, %292, %cst_122 {dimension_numbers = #tpu.dot_dimension_numbers<[1], [0], [0], [1], [0, 0, 1, 1], [], []>} : vector<8x8xf32>, vector<8x16xf32>, vector<8x16xf32> -> vector<8x16xf32>
    %308 = tpu.concatenate %289, %307 in 1 : vector<8x16xf32>, vector<8x16xf32> -> vector<8x32xf32>
    %309 = tpu.concatenate %270, %308 in 0 : vector<8x32xf32>, vector<8x32xf32> -> vector<16x32xf32>
    %c1_123 = arith.constant 1 : index
    %c0_124 = arith.constant 0 : index
    %c0_125 = arith.constant 0 : index
    %310 = vector.load %arg6[%c1_123, %c0_124, %c0_125] : memref<2x32x32xf32, #tpu.memory_space<vmem>>, vector<1x32x32xf32>
    %311 = vector.shape_cast %310 : vector<1x32x32xf32> to vector<32x32xf32>
    %cst_126 = arith.constant dense<0.000000e+00> : vector<16x32xf32>
    %312 = tpu.matmul %309, %311, %cst_126 {dimension_numbers = #tpu.dot_dimension_numbers<[1], [0], [0], [1], [0, 0, 1, 1], [], []>} : vector<16x32xf32>, vector<32x32xf32>, vector<16x32xf32> -> vector<16x32xf32>
    %c1_127 = arith.constant 1 : index
    %c0_128 = arith.constant 0 : index
    %c0_129 = arith.constant 0 : index
    %313 = vector.load %arg7[%c1_127, %c0_128, %c0_129] : memref<2x1x32xf32, #tpu.memory_space<vmem>>, vector<1x1x32xf32>
    %314 = vector.shape_cast %313 : vector<1x1x32xf32> to vector<1x32xf32>
    %315 = vector.broadcast %314 : vector<1x32xf32> to vector<16x32xf32>
    %316 = arith.addf %312, %315 : vector<16x32xf32>
    %317 = arith.addf %316, %225 : vector<16x32xf32>
    %c1_130 = arith.constant 1 : index
    %c0_131 = arith.constant 0 : index
    %c0_132 = arith.constant 0 : index
    %318 = vector.load %arg8[%c1_130, %c0_131, %c0_132] : memref<2x1x32xf32, #tpu.memory_space<vmem>>, vector<1x1x32xf32>
    %319 = vector.shape_cast %318 : vector<1x1x32xf32> to vector<1x32xf32>
    %c1_133 = arith.constant 1 : index
    %c0_134 = arith.constant 0 : index
    %c0_135 = arith.constant 0 : index
    %320 = vector.load %arg9[%c1_133, %c0_134, %c0_135] : memref<2x1x32xf32, #tpu.memory_space<vmem>>, vector<1x1x32xf32>
    %321 = vector.shape_cast %320 : vector<1x1x32xf32> to vector<1x32xf32>
    %cst_136 = arith.constant dense<0.000000e+00> : vector<16xf32>
    %322 = vector.multi_reduction <add>, %317, %cst_136 [1] : vector<16x32xf32> to vector<16xf32>
    %323 = vector.shape_cast %322 : vector<16xf32> to vector<16x1xf32>
    %cst_137 = arith.constant 3.200000e+01 : f32
    %324 = vector.broadcast %cst_137 : f32 to vector<16x1xf32>
    %325 = arith.divf %323, %324 : vector<16x1xf32>
    %326 = vector.broadcast %325 : vector<16x1xf32> to vector<16x32xf32>
    %327 = arith.subf %317, %326 : vector<16x32xf32>
    %328 = arith.mulf %327, %327 : vector<16x32xf32>
    %cst_138 = arith.constant dense<0.000000e+00> : vector<16xf32>
    %329 = vector.multi_reduction <add>, %328, %cst_138 [1] : vector<16x32xf32> to vector<16xf32>
    %330 = vector.shape_cast %329 : vector<16xf32> to vector<16x1xf32>
    %cst_139 = arith.constant 3.200000e+01 : f32
    %331 = vector.broadcast %cst_139 : f32 to vector<16x1xf32>
    %332 = arith.divf %330, %331 : vector<16x1xf32>
    %333 = vector.broadcast %325 : vector<16x1xf32> to vector<16x32xf32>
    %334 = arith.subf %317, %333 : vector<16x32xf32>
    %cst_140 = arith.constant 9.99999996E-13 : f32
    %335 = vector.broadcast %cst_140 : f32 to vector<16x1xf32>
    %336 = arith.addf %332, %335 : vector<16x1xf32>
    %337 = math.rsqrt %336 : vector<16x1xf32>
    %338 = vector.broadcast %337 : vector<16x1xf32> to vector<16x32xf32>
    %339 = arith.mulf %334, %338 : vector<16x32xf32>
    %340 = vector.broadcast %319 : vector<1x32xf32> to vector<16x32xf32>
    %341 = arith.mulf %339, %340 : vector<16x32xf32>
    %342 = vector.broadcast %321 : vector<1x32xf32> to vector<16x32xf32>
    %343 = arith.addf %341, %342 : vector<16x32xf32>
    %c1_141 = arith.constant 1 : index
    %c0_142 = arith.constant 0 : index
    %c0_143 = arith.constant 0 : index
    %344 = vector.load %arg10[%c1_141, %c0_142, %c0_143] : memref<2x32x64xf32, #tpu.memory_space<vmem>>, vector<1x32x64xf32>
    %345 = vector.shape_cast %344 : vector<1x32x64xf32> to vector<32x64xf32>
    %cst_144 = arith.constant dense<0.000000e+00> : vector<16x64xf32>
    %346 = tpu.matmul %343, %345, %cst_144 {dimension_numbers = #tpu.dot_dimension_numbers<[1], [0], [0], [1], [0, 0, 1, 1], [], []>} : vector<16x32xf32>, vector<32x64xf32>, vector<16x64xf32> -> vector<16x64xf32>
    %c1_145 = arith.constant 1 : index
    %c0_146 = arith.constant 0 : index
    %c0_147 = arith.constant 0 : index
    %347 = vector.load %arg11[%c1_145, %c0_146, %c0_147] : memref<2x1x64xf32, #tpu.memory_space<vmem>>, vector<1x1x64xf32>
    %348 = vector.shape_cast %347 : vector<1x1x64xf32> to vector<1x64xf32>
    %349 = vector.broadcast %348 : vector<1x64xf32> to vector<16x64xf32>
    %350 = arith.addf %346, %349 : vector<16x64xf32>
    %cst_148 = arith.constant 5.000000e-01 : f32
    %351 = vector.broadcast %cst_148 : f32 to vector<16x64xf32>
    %352 = arith.mulf %351, %350 : vector<16x64xf32>
    %cst_149 = arith.constant 0.707106769 : f32
    %353 = vector.broadcast %cst_149 : f32 to vector<16x64xf32>
    %354 = arith.mulf %350, %353 : vector<16x64xf32>
    %cst_150 = arith.constant 0.000000e+00 : f32
    %355 = vector.broadcast %cst_150 : f32 to vector<16x64xf32>
    %356 = arith.cmpf oge, %354, %355 : vector<16x64xf32>
    %cst_151 = arith.constant 1.000000e+00 : f32
    %cst_152 = arith.constant -1.000000e+00 : f32
    %357 = vector.broadcast %cst_151 : f32 to vector<16x64xf32>
    %358 = vector.broadcast %cst_152 : f32 to vector<16x64xf32>
    %359 = arith.select %356, %357, %358 : vector<16x64xi1>, vector<16x64xf32>
    %360 = math.absf %354 : vector<16x64xf32>
    %cst_153 = arith.constant 0.327591091 : f32
    %361 = vector.broadcast %cst_153 : f32 to vector<16x64xf32>
    %362 = arith.mulf %361, %360 : vector<16x64xf32>
    %cst_154 = arith.constant 1.000000e+00 : f32
    %363 = vector.broadcast %cst_154 : f32 to vector<16x64xf32>
    %364 = arith.addf %363, %362 : vector<16x64xf32>
    %cst_155 = arith.constant 1.000000e+00 : f32
    %365 = vector.broadcast %cst_155 : f32 to vector<16x64xf32>
    %366 = arith.divf %365, %364 : vector<16x64xf32>
    %cst_156 = arith.constant 1.06140542 : f32
    %367 = vector.broadcast %cst_156 : f32 to vector<16x64xf32>
    %368 = arith.mulf %367, %366 : vector<16x64xf32>
    %cst_157 = arith.constant -1.45315206 : f32
    %369 = vector.broadcast %cst_157 : f32 to vector<16x64xf32>
    %370 = arith.addf %368, %369 : vector<16x64xf32>
    %371 = arith.mulf %370, %366 : vector<16x64xf32>
    %cst_158 = arith.constant 1.42141378 : f32
    %372 = vector.broadcast %cst_158 : f32 to vector<16x64xf32>
    %373 = arith.addf %371, %372 : vector<16x64xf32>
    %374 = arith.mulf %373, %366 : vector<16x64xf32>
    %cst_159 = arith.constant -0.284496725 : f32
    %375 = vector.broadcast %cst_159 : f32 to vector<16x64xf32>
    %376 = arith.addf %374, %375 : vector<16x64xf32>
    %377 = arith.mulf %376, %366 : vector<16x64xf32>
    %cst_160 = arith.constant 0.254829586 : f32
    %378 = vector.broadcast %cst_160 : f32 to vector<16x64xf32>
    %379 = arith.addf %377, %378 : vector<16x64xf32>
    %380 = arith.mulf %379, %366 : vector<16x64xf32>
    %cst_161 = arith.constant 0.000000e+00 : f32
    %381 = vector.broadcast %cst_161 : f32 to vector<16x64xf32>
    %382 = arith.subf %381, %360 : vector<16x64xf32>
    %383 = arith.mulf %382, %360 : vector<16x64xf32>
    %384 = math.exp %383 : vector<16x64xf32>
    %385 = arith.mulf %380, %384 : vector<16x64xf32>
    %cst_162 = arith.constant 1.000000e+00 : f32
    %386 = vector.broadcast %cst_162 : f32 to vector<16x64xf32>
    %387 = arith.subf %386, %385 : vector<16x64xf32>
    %388 = arith.mulf %359, %387 : vector<16x64xf32>
    %cst_163 = arith.constant 1.000000e+00 : f32
    %389 = vector.broadcast %cst_163 : f32 to vector<16x64xf32>
    %390 = arith.addf %389, %388 : vector<16x64xf32>
    %391 = arith.mulf %352, %390 : vector<16x64xf32>
    %c1_164 = arith.constant 1 : index
    %c0_165 = arith.constant 0 : index
    %c0_166 = arith.constant 0 : index
    %392 = vector.load %arg12[%c1_164, %c0_165, %c0_166] : memref<2x64x32xf32, #tpu.memory_space<vmem>>, vector<1x64x32xf32>
    %393 = vector.shape_cast %392 : vector<1x64x32xf32> to vector<64x32xf32>
    %cst_167 = arith.constant dense<0.000000e+00> : vector<16x32xf32>
    %394 = tpu.matmul %391, %393, %cst_167 {dimension_numbers = #tpu.dot_dimension_numbers<[1], [0], [0], [1], [0, 0, 1, 1], [], []>} : vector<16x64xf32>, vector<64x32xf32>, vector<16x32xf32> -> vector<16x32xf32>
    %c1_168 = arith.constant 1 : index
    %c0_169 = arith.constant 0 : index
    %c0_170 = arith.constant 0 : index
    %395 = vector.load %arg13[%c1_168, %c0_169, %c0_170] : memref<2x1x32xf32, #tpu.memory_space<vmem>>, vector<1x1x32xf32>
    %396 = vector.shape_cast %395 : vector<1x1x32xf32> to vector<1x32xf32>
    %397 = vector.broadcast %396 : vector<1x32xf32> to vector<16x32xf32>
    %398 = arith.addf %394, %397 : vector<16x32xf32>
    %399 = arith.addf %398, %343 : vector<16x32xf32>
    %c1_171 = arith.constant 1 : index
    %c0_172 = arith.constant 0 : index
    %c0_173 = arith.constant 0 : index
    %400 = vector.load %arg14[%c1_171, %c0_172, %c0_173] : memref<2x1x32xf32, #tpu.memory_space<vmem>>, vector<1x1x32xf32>
    %401 = vector.shape_cast %400 : vector<1x1x32xf32> to vector<1x32xf32>
    %c1_174 = arith.constant 1 : index
    %c0_175 = arith.constant 0 : index
    %c0_176 = arith.constant 0 : index
    %402 = vector.load %arg15[%c1_174, %c0_175, %c0_176] : memref<2x1x32xf32, #tpu.memory_space<vmem>>, vector<1x1x32xf32>
    %403 = vector.shape_cast %402 : vector<1x1x32xf32> to vector<1x32xf32>
    %cst_177 = arith.constant dense<0.000000e+00> : vector<16xf32>
    %404 = vector.multi_reduction <add>, %399, %cst_177 [1] : vector<16x32xf32> to vector<16xf32>
    %405 = vector.shape_cast %404 : vector<16xf32> to vector<16x1xf32>
    %cst_178 = arith.constant 3.200000e+01 : f32
    %406 = vector.broadcast %cst_178 : f32 to vector<16x1xf32>
    %407 = arith.divf %405, %406 : vector<16x1xf32>
    %408 = vector.broadcast %407 : vector<16x1xf32> to vector<16x32xf32>
    %409 = arith.subf %399, %408 : vector<16x32xf32>
    %410 = arith.mulf %409, %409 : vector<16x32xf32>
    %cst_179 = arith.constant dense<0.000000e+00> : vector<16xf32>
    %411 = vector.multi_reduction <add>, %410, %cst_179 [1] : vector<16x32xf32> to vector<16xf32>
    %412 = vector.shape_cast %411 : vector<16xf32> to vector<16x1xf32>
    %cst_180 = arith.constant 3.200000e+01 : f32
    %413 = vector.broadcast %cst_180 : f32 to vector<16x1xf32>
    %414 = arith.divf %412, %413 : vector<16x1xf32>
    %415 = vector.broadcast %407 : vector<16x1xf32> to vector<16x32xf32>
    %416 = arith.subf %399, %415 : vector<16x32xf32>
    %cst_181 = arith.constant 9.99999996E-13 : f32
    %417 = vector.broadcast %cst_181 : f32 to vector<16x1xf32>
    %418 = arith.addf %414, %417 : vector<16x1xf32>
    %419 = math.rsqrt %418 : vector<16x1xf32>
    %420 = vector.broadcast %419 : vector<16x1xf32> to vector<16x32xf32>
    %421 = arith.mulf %416, %420 : vector<16x32xf32>
    %422 = vector.broadcast %401 : vector<1x32xf32> to vector<16x32xf32>
    %423 = arith.mulf %421, %422 : vector<16x32xf32>
    %424 = vector.broadcast %403 : vector<1x32xf32> to vector<16x32xf32>
    %425 = arith.addf %423, %424 : vector<16x32xf32>
    %c0_182 = arith.constant 0 : index
    %c0_183 = arith.constant 0 : index
    %426 = vector.load %arg18[%c0_182, %c0_183] : memref<16x32xf32, #tpu.memory_space<vmem>>, vector<16x32xf32>
    tpu.vector_store %arg18[%c0_182, %c0_183], %425 {strides = array<i32>} : memref<16x32xf32, #tpu.memory_space<vmem>>, vector<16x32xf32>,
    %427 = vector.extract_strided_slice %425 {offsets = [0, 0], sizes = [1, 32], strides = [1, 1]} : vector<16x32xf32> to vector<1x32xf32>
    %428 = vector.extract_strided_slice %425 {offsets = [8, 0], sizes = [1, 32], strides = [1, 1]} : vector<16x32xf32> to vector<1x32xf32>
    %429 = tpu.concatenate %427, %428 in 0 : vector<1x32xf32>, vector<1x32xf32> -> vector<2x32xf32>
    %c0_184 = arith.constant 0 : index
    %c0_185 = arith.constant 0 : index
    %430 = vector.load %arg16[%c0_184, %c0_185] : memref<32x32xf32, #tpu.memory_space<vmem>>, vector<32x32xf32>
    %cst_186 = arith.constant dense<0.000000e+00> : vector<2x32xf32>
    %431 = tpu.matmul %429, %430, %cst_186 {dimension_numbers = #tpu.dot_dimension_numbers<[1], [0], [0], [1], [0, 0, 1, 1], [], []>} : vector<2x32xf32>, vector<32x32xf32>, vector<2x32xf32> -> vector<2x32xf32>
    %c0_187 = arith.constant 0 : index
    %c0_188 = arith.constant 0 : index
    %432 = vector.load %arg17[%c0_187, %c0_188] : memref<1x32xf32, #tpu.memory_space<vmem>>, vector<1x32xf32>
    %433 = vector.broadcast %432 : vector<1x32xf32> to vector<2x32xf32>
    %434 = arith.addf %431, %433 : vector<2x32xf32>
    %435 = math.tanh %434 : vector<2x32xf32>
    %c0_189 = arith.constant 0 : index
    %c0_190 = arith.constant 0 : index
    %436 = vector.load %arg19[%c0_189, %c0_190] : memref<2x32xf32, #tpu.memory_space<vmem>>, vector<2x32xf32>
    tpu.vector_store %arg19[%c0_189, %c0_190], %435 {strides = array<i32>} : memref<2x32xf32, #tpu.memory_space<vmem>>, vector<2x32xf32>,
    return
  }
}

</mosaic_0001>

<llo_original>
// kernel: bert_encoder_forward.1
$region0: #{bert_encoder_forward.1}
  #allocation0 [shape = 'u32[]', space=smem, size = 0x4, offset = 0x4, fixed_abs, tag = 'smem constant byte address 0x4 - core index']
  #allocation1 [shape = 'u32[72,128]{1,0:T(1,128)}', space=vmem, size = 0x9000, scoped, tag = 'internal scratch']
  %s0 = inlined_call_operand.vmem [shape: f32[16,32], index: 0, kind: input, shape index: {}]
  %s1 = inlined_call_operand.vmem [shape: f32[2,8], index: 1, kind: input, shape index: {}]
  %s2 = inlined_call_operand.vmem [shape: f32[1,32], index: 2, kind: input, shape index: {}]
  %s3 = inlined_call_operand.vmem [shape: f32[1,32], index: 3, kind: input, shape index: {}]
  %s4 = inlined_call_operand.vmem [shape: f32[2,32,96], index: 4, kind: input, shape index: {}]
  %s5 = inlined_call_operand.vmem [shape: f32[2,1,96], index: 5, kind: input, shape index: {}]
  %s6 = inlined_call_operand.vmem [shape: f32[2,32,32], index: 6, kind: input, shape index: {}]
  %s7 = inlined_call_operand.vmem [shape: f32[2,1,32], index: 7, kind: input, shape index: {}]
  %s8 = inlined_call_operand.vmem [shape: f32[2,1,32], index: 8, kind: input, shape index: {}]
  %s9 = inlined_call_operand.vmem [shape: f32[2,1,32], index: 9, kind: input, shape index: {}]
  %s10 = inlined_call_operand.vmem [shape: f32[2,32,64], index: 10, kind: input, shape index: {}]
  %s11 = inlined_call_operand.vmem [shape: f32[2,1,64], index: 11, kind: input, shape index: {}]
  %s12 = inlined_call_operand.vmem [shape: f32[2,64,32], index: 12, kind: input, shape index: {}]
  %s13 = inlined_call_operand.vmem [shape: f32[2,1,32], index: 13, kind: input, shape index: {}]
  %s14 = inlined_call_operand.vmem [shape: f32[2,1,32], index: 14, kind: input, shape index: {}]
  %s15 = inlined_call_operand.vmem [shape: f32[2,1,32], index: 15, kind: input, shape index: {}]
  %s16 = inlined_call_operand.vmem [shape: f32[32,32], index: 16, kind: input, shape index: {}]
  %s17 = inlined_call_operand.vmem [shape: f32[1,32], index: 17, kind: input, shape index: {}]
  %s18 = inlined_call_operand.hbm [shape: f32[16,32], index: 18, kind: output, shape index: {0}]
  %s19 = inlined_call_operand.hbm [shape: f32[2,32], index: 19, kind: output, shape index: {1}]
  %20 = xla_tuple %s18, %s19
  %s21 = sld [smem:[#allocation0]]
  $region90: #{bert_encoder_forward.1} parent=0
    _
  %s23 = ssub.s32 1, %s21
  %s24 = scalar_select 0, %s23, %s21
  $region1: #{bert_encoder_forward.1} parent=0
    #allocation2 [shape = 'u8[8192]{0}', space=vmem, size = 0x2000, scoped, tag = 'output window, operand 0, single buffered']
    #allocation3 [shape = 's32[1]{0}', space=sflag, size = 0x4, scoped, tag = 'scoped memory for bert_encoder_forward.1']
    #allocation4 [shape = 'u8[1024]{0}', space=vmem, size = 0x400, scoped, tag = 'output window, operand 1, single buffered']
    #allocation5 [shape = 's32[1]{0}', space=sflag, size = 0x4, scoped, tag = 'scoped memory for bert_encoder_forward.1']
    %25 = vsyncpa [#allocation3], 0
    %26 = vsyncpa [#allocation5], 0
    // Predicated region
    $region2: #{bert_encoder_forward.1} parent=1 // pred_check
      _
    $region3: #{bert_encoder_forward.1} parent=1 // pred_check_branch
      %28 = sbr.rel (0) target = $region5
    $region4: #{bert_encoder_forward.1} parent=1 // pred_region
      _
    $region5: #{bert_encoder_forward.1} parent=1 // pred_fallthru
      _
    // Predicated region
    $region6: #{bert_encoder_forward.1} parent=1 // pred_check
      _
    $region7: #{bert_encoder_forward.1} parent=1 // pred_check_branch
      %30 = sbr.rel (0) target = $region9
    $region8: #{bert_encoder_forward.1} parent=1 // pred_region
      _
    $region9: #{bert_encoder_forward.1} parent=1 // pred_fallthru
      _
    // Predicated region
    $region10: #{bert_encoder_forward.1} parent=1 // pred_check
      _
    $region11: #{bert_encoder_forward.1} parent=1 // pred_check_branch
      %32 = sbr.rel (0) target = $region13
    $region12: #{bert_encoder_forward.1} parent=1 // pred_region
      _
    $region13: #{bert_encoder_forward.1} parent=1 // pred_fallthru
      _
    // Predicated region
    $region14: #{bert_encoder_forward.1} parent=1 // pred_check
      _
    $region15: #{bert_encoder_forward.1} parent=1 // pred_check_branch
      %34 = sbr.rel (0) target = $region17
    $region16: #{bert_encoder_forward.1} parent=1 // pred_region
      _
    $region17: #{bert_encoder_forward.1} parent=1 // pred_fallthru
      _
    // Predicated region
    $region18: #{bert_encoder_forward.1} parent=1 // pred_check
      _
    $region19: #{bert_encoder_forward.1} parent=1 // pred_check_branch
      %36 = sbr.rel (0) target = $region21
    $region20: #{bert_encoder_forward.1} parent=1 // pred_region
      _
    $region21: #{bert_encoder_forward.1} parent=1 // pred_fallthru
      _
    // Predicated region
    $region22: #{bert_encoder_forward.1} parent=1 // pred_check
      _
    $region23: #{bert_encoder_forward.1} parent=1 // pred_check_branch
      %38 = sbr.rel (0) target = $region25
    $region24: #{bert_encoder_forward.1} parent=1 // pred_region
      _
    $region25: #{bert_encoder_forward.1} parent=1 // pred_fallthru
      _
    // Predicated region
    $region26: #{bert_encoder_forward.1} parent=1 // pred_check
      _
    $region27: #{bert_encoder_forward.1} parent=1 // pred_check_branch
      %40 = sbr.rel (0) target = $region29
    $region28: #{bert_encoder_forward.1} parent=1 // pred_region
      _
    $region29: #{bert_encoder_forward.1} parent=1 // pred_fallthru
      _
    // Predicated region
    $region30: #{bert_encoder_forward.1} parent=1 // pred_check
      _
    $region31: #{bert_encoder_forward.1} parent=1 // pred_check_branch
      %42 = sbr.rel (0) target = $region33
    $region32: #{bert_encoder_forward.1} parent=1 // pred_region
      _
    $region33: #{bert_encoder_forward.1} parent=1 // pred_fallthru
      _
    // Predicated region
    $region34: #{bert_encoder_forward.1} parent=1 // pred_check
      _
    $region35: #{bert_encoder_forward.1} parent=1 // pred_check_branch
      %44 = sbr.rel (0) target = $region37
    $region36: #{bert_encoder_forward.1} parent=1 // pred_region
      _
    $region37: #{bert_encoder_forward.1} parent=1 // pred_fallthru
      _
    // Predicated region
    $region38: #{bert_encoder_forward.1} parent=1 // pred_check
      _
    $region39: #{bert_encoder_forward.1} parent=1 // pred_check_branch
      %46 = sbr.rel (0) target = $region41
    $region40: #{bert_encoder_forward.1} parent=1 // pred_region
      _
    $region41: #{bert_encoder_forward.1} parent=1 // pred_fallthru
      _
    // Predicated region
    $region42: #{bert_encoder_forward.1} parent=1 // pred_check
      _
    $region43: #{bert_encoder_forward.1} parent=1 // pred_check_branch
      %48 = sbr.rel (0) target = $region45
    $region44: #{bert_encoder_forward.1} parent=1 // pred_region
      _
    $region45: #{bert_encoder_forward.1} parent=1 // pred_fallthru
      _
    // Predicated region
    $region46: #{bert_encoder_forward.1} parent=1 // pred_check
      _
    $region47: #{bert_encoder_forward.1} parent=1 // pred_check_branch
      %50 = sbr.rel (0) target = $region49
    $region48: #{bert_encoder_forward.1} parent=1 // pred_region
      _
    $region49: #{bert_encoder_forward.1} parent=1 // pred_fallthru
      _
    // Predicated region
    $region50: #{bert_encoder_forward.1} parent=1 // pred_check
      _
    $region51: #{bert_encoder_forward.1} parent=1 // pred_check_branch
      %52 = sbr.rel (0) target = $region53
    $region52: #{bert_encoder_forward.1} parent=1 // pred_region
      _
    $region53: #{bert_encoder_forward.1} parent=1 // pred_fallthru
      _
    // Predicated region
    $region54: #{bert_encoder_forward.1} parent=1 // pred_check
      _
    $region55: #{bert_encoder_forward.1} parent=1 // pred_check_branch
      %54 = sbr.rel (0) target = $region57
    $region56: #{bert_encoder_forward.1} parent=1 // pred_region
      _
    $region57: #{bert_encoder_forward.1} parent=1 // pred_fallthru
      _
    // Predicated region
    $region58: #{bert_encoder_forward.1} parent=1 // pred_check
      _
    $region59: #{bert_encoder_forward.1} parent=1 // pred_check_branch
      %56 = sbr.rel (0) target = $region61
    $region60: #{bert_encoder_forward.1} parent=1 // pred_region
      _
    $region61: #{bert_encoder_forward.1} parent=1 // pred_fallthru
      _
    // Predicated region
    $region62: #{bert_encoder_forward.1} parent=1 // pred_check
      _
    $region63: #{bert_encoder_forward.1} parent=1 // pred_check_branch
      %58 = sbr.rel (0) target = $region65
    $region64: #{bert_encoder_forward.1} parent=1 // pred_region
      _
    $region65: #{bert_encoder_forward.1} parent=1 // pred_fallthru
      _
    // Predicated region
    $region66: #{bert_encoder_forward.1} parent=1 // pred_check
      _
    $region67: #{bert_encoder_forward.1} parent=1 // pred_check_branch
      %60 = sbr.rel (0) target = $region69
    $region68: #{bert_encoder_forward.1} parent=1 // pred_region
      _
    $region69: #{bert_encoder_forward.1} parent=1 // pred_fallthru
      _
    // Predicated region
    $region70: #{bert_encoder_forward.1} parent=1 // pred_check
      _
    $region71: #{bert_encoder_forward.1} parent=1 // pred_check_branch
      %62 = sbr.rel (0) target = $region73
    $region72: #{bert_encoder_forward.1} parent=1 // pred_region
      _
    $region73: #{bert_encoder_forward.1} parent=1 // pred_fallthru
      _
    %v63 = vld [vmem:[%s1] sm:$0x3]
    %v64 = vld [vmem:[%s0] sm:$0xff]
    %v65 = vld [vmem:[%s0 + $0x8] sm:$0xff]
    %v66 = vld [vmem:[%s2] sm:$0x1]
    %v67 = vld [vmem:[%s3] sm:$0x1]
    %vm68 = vcmask 261120
    %v69 = vsel %vm68, %v64, 0.0
    %70 = vadd.xlane.f32.xlu0 %v69
    %v71 = vpop.xlane.xlu0 %70
    %v72 = vsel %vm68, %v65, 0.0
    %73 = vadd.xlane.f32.xlu0 %v72
    %v74 = vpop.xlane.xlu0 %73
    %v75 = vrcp.pop 32.0
    %v76 = vmul.f32 32.0, %v75
    %v77 = vsub.f32 1.0, %v76
    %v78 = vmul.f32 %v75, %v77
    %v79 = vadd.f32 %v75, %v78
    %vm80 = vweird.f32 %v75
    %v81 = vsel %vm80, %v75, %v79
    %v82 = vmul.f32 %v71, %v81
    %v83 = vmul.f32 %v74, %v81
    %v84 = vsub.f32 %v64, %v82
    %v85 = vsub.f32 %v65, %v83
    %v86 = vmul.f32 %v84, %v84
    %v87 = vmul.f32 %v85, %v85
    %v88 = vsel %vm68, %v86, 0.0
    %89 = vadd.xlane.f32.xlu0 %v88
    %v90 = vpop.xlane.xlu0 %89
    %v91 = vsel %vm68, %v87, 0.0
    %92 = vadd.xlane.f32.xlu0 %v91
    %v93 = vpop.xlane.xlu0 %92
    %v94 = vmul.f32 %v90, %v81
    %v95 = vmul.f32 %v93, %v81
    %v96 = vadd.f32 %v94, 1e-12
    %v97 = vadd.f32 %v95, 1e-12
    %v98 = vrsqrt.pop %v96
    %v99 = vmul.f32 %v98, %v96
    %v100 = vmul.f32 %v99, %v98
    %v101 = vmul.f32 0.5, %v100
    %v102 = vsub.f32 1.5, %v101
    %v103 = vmul.f32 %v98, %v102
    %vm104 = vweird.f32 %v96
    %vm105 = vweird.f32 %v98
    %vm106 = vmor %vm104, %vm105
    %v107 = vsel %vm106, %v98, %v103
    %v108 = vrsqrt.pop %v97
    %v109 = vmul.f32 %v108, %v97
    %v110 = vmul.f32 %v109, %v108
    %v111 = vmul.f32 0.5, %v110
    %v112 = vsub.f32 1.5, %v111
    %v113 = vmul.f32 %v108, %v112
    %vm114 = vweird.f32 %v97
    %vm115 = vweird.f32 %v108
    %vm116 = vmor %vm114, %vm115
    %v117 = vsel %vm116, %v108, %v113
    %v118 = vmul.f32 %v84, %v107
    %v119 = vmul.f32 %v85, %v117
    %v121 = vperm.slane %v66, 0
    %v123 = vmul.f32 %v118, %v121
    %v124 = vmul.f32 %v119, %v121
    %v126 = vperm.slane %v67, 0
    %v128 = vadd.f32 %v123, %v126
    %v129 = vadd.f32 %v124, %v126
    %v130 = vld [vmem:[%s4] sm:$0xff]
    %v131 = vld [vmem:[%s4 + $0x8] sm:$0xff]
    %v132 = vld [vmem:[%s4 + $0x10] sm:$0xff]
    %v133 = vld [vmem:[%s4 + $0x18] sm:$0xff]
    %v134 = vld [vmem:[%s5] sm:$0x1]
    %v136 = vperm.slane %v134, 0
    %v139 = vsel %vm68, %v128, 0
    %v142 = vsel %vm68, %v129, 0
    %144 = vmatpush.msra.mxu0 0.0
    %145 = vmatpush.msra.mxu0 0.0
    %146 = vmatpush.msra.mxu0 0.0
    %147 = vmatpush.msra.mxu0 0.0
    %148 = vmatpush.msra.mxu0 0.0
    %149 = vmatpush.msra.mxu0 0.0
    %150 = vmatpush.msra.mxu0 0.0
    %151 = vmatpush.msra.mxu0 0.0
    %152 = vmatpush.msra.mxu0 0.0
    %153 = vmatpush.msra.mxu0 0.0
    %154 = vmatpush.msra.mxu0 0.0
    %155 = vmatpush.msra.mxu0 0.0
    %156 = vmatpush.msra.mxu0 %v133
    %157 = vmatpush.msra.mxu0 %v132
    %158 = vmatpush.msra.mxu0 %v131
    %159 = vmatpush.msra.mxu0 %v130
    %160 = vmatmul.f32.gmra.mxu0 %v139
    %v161 = vpop.f32.mrf.mxu0
    %v162 = vadd.f32 %v136, %v161
    %163 = vmatmul.f32.gmra.mxu0 %v142
    %v164 = vpop.f32.mrf.mxu0
    %v165 = vadd.f32 %v136, %v164
    %166 = vdwg.mxu0
    %168 = vrot.lane.b32.xlu0 %v162, 96
    %v169 = vpop.permute.xlu0 %168
    %vm170 = vcmask 130048
    %v171 = vsel %vm170, %v162, 0
    %v173 = vsel %vm170, %v169, 0
    %175 = vmatpush.xpose.msra.mxu0 0.0
    %176 = vmatpush.xpose.msra.mxu0 0.0
    %177 = vmatpush.xpose.msra.mxu0 0.0
    %178 = vmatpush.xpose.msra.mxu0 0.0
    %179 = vmatpush.xpose.msra.mxu0 0.0
    %180 = vmatpush.xpose.msra.mxu0 0.0
    %181 = vmatpush.xpose.msra.mxu0 0.0
    %182 = vmatpush.xpose.msra.mxu0 0.0
    %183 = vmatpush.xpose.msra.mxu0 0.0
    %184 = vmatpush.xpose.msra.mxu0 0.0
    %185 = vmatpush.xpose.msra.mxu0 0.0
    %186 = vmatpush.xpose.msra.mxu0 0.0
    %187 = vmatpush.xpose.msra.mxu0 0.0
    %188 = vmatpush.xpose.msra.mxu0 0.0
    %189 = vmatpush.xpose.msra.mxu0 0.0
    %190 = vmatpush.xpose.msra.mxu0 %v173
    %191 = vmatmul.f32.gmra.mxu0 %v171
    %v192 = vpop.f32.mrf.mxu0
    %v193 = vadd.f32 0.0, %v192
    %194 = vdwg.mxu0
    %v195 = vmul.f32 %v193, 0.25
    %v196 = vperm.slane %v63, 0
    %v197 = vadd.f32 %v195, %v196
    %vm198 = vcmask 64512
    %v199 = vsel %vm198, %v197, -inf
    %200 = vmax.xlane.f32.xlu0 %v199
    %v201 = vpop.xlane.xlu0 %200
    %v202 = vsub.f32 %v197, %v201
    %v203 = vmul.f32 %v202, 1.442695
    %v204 = vpow.pop %v203
    %v205 = vsel %vm198, %v204, 0.0
    %206 = vadd.xlane.f32.xlu0 %v205
    %v207 = vpop.xlane.xlu0 %206
    %v208 = vrcp.pop %v207
    %v209 = vmul.f32 %v207, %v208
    %v210 = vsub.f32 1.0, %v209
    %v211 = vmul.f32 %v208, %v210
    %v212 = vadd.f32 %v208, %v211
    %vm213 = vweird.f32 %v207
    %vm214 = vweird.f32 %v208
    %vm215 = vmor %vm213, %vm214
    %v216 = vsel %vm215, %v208, %v212
    %v217 = vand.u32 2147483647, %v207
    %vm218 = vcmp.eq.f32.partialorder %v217, 8.507059e+37
    %v219 = vand.u32 %v207, 2147483648
    %v220 = vor.u32 1.1754944e-38, %v219
    %v221 = vsel %vm218, %v220, %v216
    %v222 = vmul.f32 %v204, %v221
    %223 = vrot.lane.b32.xlu0 %v162, 64
    %v224 = vpop.permute.xlu0 %223
    %v227 = vsel %vm198, %v222, 0
    %229 = vmatpush.msra.mxu0 0.0
    %230 = vmatpush.msra.mxu0 0.0
    %231 = vmatpush.msra.mxu0 0.0
    %232 = vmatpush.msra.mxu0 0.0
    %233 = vmatpush.msra.mxu0 0.0
    %234 = vmatpush.msra.mxu0 0.0
    %235 = vmatpush.msra.mxu0 0.0
    %236 = vmatpush.msra.mxu0 0.0
    %237 = vmatpush.msra.mxu0 0.0
    %238 = vmatpush.msra.mxu0 0.0
    %239 = vmatpush.msra.mxu0 0.0
    %240 = vmatpush.msra.mxu0 0.0
    %241 = vmatpush.msra.mxu0 0.0
    %242 = vmatpush.msra.mxu0 0.0
    %243 = vmatpush.msra.mxu0 0.0
    %244 = vmatpush.msra.mxu0 %v224
    %245 = vmatmul.f32.gmra.mxu0 %v227
    %v246 = vpop.f32.mrf.mxu0
    %v247 = vadd.f32 0.0, %v246
    %248 = vdwg.mxu0
    %249 = vrot.lane.b32.xlu0 %v162, 112
    %v250 = vpop.permute.xlu0 %249
    %251 = vrot.lane.b32.xlu0 %v162, 80
    %v252 = vpop.permute.xlu0 %251
    %v253 = vsel %vm170, %v250, 0
    %v255 = vsel %vm170, %v252, 0
    %257 = vmatpush.xpose.msra.mxu0 0.0
    %258 = vmatpush.xpose.msra.mxu0 0.0
    %259 = vmatpush.xpose.msra.mxu0 0.0
    %260 = vmatpush.xpose.msra.mxu0 0.0
    %261 = vmatpush.xpose.msra.mxu0 0.0
    %262 = vmatpush.xpose.msra.mxu0 0.0
    %263 = vmatpush.xpose.msra.mxu0 0.0
    %264 = vmatpush.xpose.msra.mxu0 0.0
    %265 = vmatpush.xpose.msra.mxu0 0.0
    %266 = vmatpush.xpose.msra.mxu0 0.0
    %267 = vmatpush.xpose.msra.mxu0 0.0
    %268 = vmatpush.xpose.msra.mxu0 0.0
    %269 = vmatpush.xpose.msra.mxu0 0.0
    %270 = vmatpush.xpose.msra.mxu0 0.0
    %271 = vmatpush.xpose.msra.mxu0 0.0
    %272 = vmatpush.xpose.msra.mxu0 %v255
    %273 = vmatmul.f32.gmra.mxu0 %v253
    %v274 = vpop.f32.mrf.mxu0
    %v275 = vadd.f32 0.0, %v274
    %276 = vdwg.mxu0
    %v277 = vmul.f32 %v275, 0.25
    %v278 = vadd.f32 %v277, %v196
    %v279 = vsel %vm198, %v278, -inf
    %280 = vmax.xlane.f32.xlu0 %v279
    %v281 = vpop.xlane.xlu0 %280
    %v282 = vsub.f32 %v278, %v281
    %v283 = vmul.f32 %v282, 1.442695
    %v284 = vpow.pop %v283
    %v285 = vsel %vm198, %v284, 0.0
    %286 = vadd.xlane.f32.xlu0 %v285
    %v287 = vpop.xlane.xlu0 %286
    %v288 = vrcp.pop %v287
    %v289 = vmul.f32 %v287, %v288
    %v290 = vsub.f32 1.0, %v289
    %v291 = vmul.f32 %v288, %v290
    %v292 = vadd.f32 %v288, %v291
    %vm293 = vweird.f32 %v287
    %vm294 = vweird.f32 %v288
    %vm295 = vmor %vm293, %vm294
    %v296 = vsel %vm295, %v288, %v292
    %v297 = vand.u32 2147483647, %v287
    %vm298 = vcmp.eq.f32.partialorder %v297, 8.507059e+37
    %v299 = vand.u32 %v287, 2147483648
    %v300 = vor.u32 1.1754944e-38, %v299
    %v301 = vsel %vm298, %v300, %v296
    %v302 = vmul.f32 %v284, %v301
    %303 = vrot.lane.b32.xlu0 %v162, 48
    %v304 = vpop.permute.xlu0 %303
    %v307 = vsel %vm198, %v302, 0
    %309 = vmatpush.msra.mxu0 0.0
    %310 = vmatpush.msra.mxu0 0.0
    %311 = vmatpush.msra.mxu0 0.0
    %312 = vmatpush.msra.mxu0 0.0
    %313 = vmatpush.msra.mxu0 0.0
    %314 = vmatpush.msra.mxu0 0.0
    %315 = vmatpush.msra.mxu0 0.0
    %316 = vmatpush.msra.mxu0 0.0
    %317 = vmatpush.msra.mxu0 0.0
    %318 = vmatpush.msra.mxu0 0.0
    %319 = vmatpush.msra.mxu0 0.0
    %320 = vmatpush.msra.mxu0 0.0
    %321 = vmatpush.msra.mxu0 0.0
    %322 = vmatpush.msra.mxu0 0.0
    %323 = vmatpush.msra.mxu0 0.0
    %324 = vmatpush.msra.mxu0 %v304
    %325 = vmatmul.f32.gmra.mxu0 %v307
    %v326 = vpop.f32.mrf.mxu0
    %v327 = vadd.f32 0.0, %v326
    %328 = vdwg.mxu0
    %330 = vrot.lane.b32.xlu0 %v327, 16
    %v331 = vpop.permute.xlu0 %330
    %v333 = vsel %vm170, %v247, %v331
    %335 = vrot.lane.b32.xlu0 %v165, 96
    %v336 = vpop.permute.xlu0 %335
    %v337 = vsel %vm170, %v165, 0
    %v339 = vsel %vm170, %v336, 0
    %341 = vmatpush.xpose.msra.mxu0 0.0
    %342 = vmatpush.xpose.msra.mxu0 0.0
    %343 = vmatpush.xpose.msra.mxu0 0.0
    %344 = vmatpush.xpose.msra.mxu0 0.0
    %345 = vmatpush.xpose.msra.mxu0 0.0
    %346 = vmatpush.xpose.msra.mxu0 0.0
    %347 = vmatpush.xpose.msra.mxu0 0.0
    %348 = vmatpush.xpose.msra.mxu0 0.0
    %349 = vmatpush.xpose.msra.mxu0 0.0
    %350 = vmatpush.xpose.msra.mxu0 0.0
    %351 = vmatpush.xpose.msra.mxu0 0.0
    %352 = vmatpush.xpose.msra.mxu0 0.0
    %353 = vmatpush.xpose.msra.mxu0 0.0
    %354 = vmatpush.xpose.msra.mxu0 0.0
    %355 = vmatpush.xpose.msra.mxu0 0.0
    %356 = vmatpush.xpose.msra.mxu0 %v339
    %357 = vmatmul.f32.gmra.mxu0 %v337
    %v358 = vpop.f32.mrf.mxu0
    %v359 = vadd.f32 0.0, %v358
    %360 = vdwg.mxu0
    %v361 = vmul.f32 %v359, 0.25
    %v362 = vperm.slane %v63, 1
    %v363 = vadd.f32 %v361, %v362
    %v364 = vsel %vm198, %v363, -inf
    %365 = vmax.xlane.f32.xlu0 %v364
    %v366 = vpop.xlane.xlu0 %365
    %v367 = vsub.f32 %v363, %v366
    %v368 = vmul.f32 %v367, 1.442695
    %v369 = vpow.pop %v368
    %v370 = vsel %vm198, %v369, 0.0
    %371 = vadd.xlane.f32.xlu0 %v370
    %v372 = vpop.xlane.xlu0 %371
    %v373 = vrcp.pop %v372
    %v374 = vmul.f32 %v372, %v373
    %v375 = vsub.f32 1.0, %v374
    %v376 = vmul.f32 %v373, %v375
    %v377 = vadd.f32 %v373, %v376
    %vm378 = vweird.f32 %v372
    %vm379 = vweird.f32 %v373
    %vm380 = vmor %vm378, %vm379
    %v381 = vsel %vm380, %v373, %v377
    %v382 = vand.u32 2147483647, %v372
    %vm383 = vcmp.eq.f32.partialorder %v382, 8.507059e+37
    %v384 = vand.u32 %v372, 2147483648
    %v385 = vor.u32 1.1754944e-38, %v384
    %v386 = vsel %vm383, %v385, %v381
    %v387 = vmul.f32 %v369, %v386
    %388 = vrot.lane.b32.xlu0 %v165, 64
    %v389 = vpop.permute.xlu0 %388
    %v392 = vsel %vm198, %v387, 0
    %394 = vmatpush.msra.mxu0 0.0
    %395 = vmatpush.msra.mxu0 0.0
    %396 = vmatpush.msra.mxu0 0.0
    %397 = vmatpush.msra.mxu0 0.0
    %398 = vmatpush.msra.mxu0 0.0
    %399 = vmatpush.msra.mxu0 0.0
    %400 = vmatpush.msra.mxu0 0.0
    %401 = vmatpush.msra.mxu0 0.0
    %402 = vmatpush.msra.mxu0 0.0
    %403 = vmatpush.msra.mxu0 0.0
    %404 = vmatpush.msra.mxu0 0.0
    %405 = vmatpush.msra.mxu0 0.0
    %406 = vmatpush.msra.mxu0 0.0
    %407 = vmatpush.msra.mxu0 0.0
    %408 = vmatpush.msra.mxu0 0.0
    %409 = vmatpush.msra.mxu0 %v389
    %410 = vmatmul.f32.gmra.mxu0 %v392
    %v411 = vpop.f32.mrf.mxu0
    %v412 = vadd.f32 0.0, %v411
    %413 = vdwg.mxu0
    %414 = vrot.lane.b32.xlu0 %v165, 112
    %v415 = vpop.permute.xlu0 %414
    %416 = vrot.lane.b32.xlu0 %v165, 80
    %v417 = vpop.permute.xlu0 %416
    %v418 = vsel %vm170, %v415, 0
    %v420 = vsel %vm170, %v417, 0
    %422 = vmatpush.xpose.msra.mxu0 0.0
    %423 = vmatpush.xpose.msra.mxu0 0.0
    %424 = vmatpush.xpose.msra.mxu0 0.0
    %425 = vmatpush.xpose.msra.mxu0 0.0
    %426 = vmatpush.xpose.msra.mxu0 0.0
    %427 = vmatpush.xpose.msra.mxu0 0.0
    %428 = vmatpush.xpose.msra.mxu0 0.0
    %429 = vmatpush.xpose.msra.mxu0 0.0
    %430 = vmatpush.xpose.msra.mxu0 0.0
    %431 = vmatpush.xpose.msra.mxu0 0.0
    %432 = vmatpush.xpose.msra.mxu0 0.0
    %433 = vmatpush.xpose.msra.mxu0 0.0
    %434 = vmatpush.xpose.msra.mxu0 0.0
    %435 = vmatpush.xpose.msra.mxu0 0.0
    %436 = vmatpush.xpose.msra.mxu0 0.0
    %437 = vmatpush.xpose.msra.mxu0 %v420
    %438 = vmatmul.f32.gmra.mxu0 %v418
    %v439 = vpop.f32.mrf.mxu0
    %v440 = vadd.f32 0.0, %v439
    %441 = vdwg.mxu0
    %v442 = vmul.f32 %v440, 0.25
    %v443 = vadd.f32 %v442, %v362
    %v444 = vsel %vm198, %v443, -inf
    %445 = vmax.xlane.f32.xlu0 %v444
    %v446 = vpop.xlane.xlu0 %445
    %v447 = vsub.f32 %v443, %v446
    %v448 = vmul.f32 %v447, 1.442695
    %v449 = vpow.pop %v448
    %v450 = vsel %vm198, %v449, 0.0
    %451 = vadd.xlane.f32.xlu0 %v450
    %v452 = vpop.xlane.xlu0 %451
    %v453 = vrcp.pop %v452
    %v454 = vmul.f32 %v452, %v453
    %v455 = vsub.f32 1.0, %v454
    %v456 = vmul.f32 %v453, %v455
    %v457 = vadd.f32 %v453, %v456
    %vm458 = vweird.f32 %v452
    %vm459 = vweird.f32 %v453
    %vm460 = vmor %vm458, %vm459
    %v461 = vsel %vm460, %v453, %v457
    %v462 = vand.u32 2147483647, %v452
    %vm463 = vcmp.eq.f32.partialorder %v462, 8.507059e+37
    %v464 = vand.u32 %v452, 2147483648
    %v465 = vor.u32 1.1754944e-38, %v464
    %v466 = vsel %vm463, %v465, %v461
    %v467 = vmul.f32 %v449, %v466
    %468 = vrot.lane.b32.xlu0 %v165, 48
    %v469 = vpop.permute.xlu0 %468
    %v472 = vsel %vm198, %v467, 0
    %474 = vmatpush.msra.mxu0 0.0
    %475 = vmatpush.msra.mxu0 0.0
    %476 = vmatpush.msra.mxu0 0.0
    %477 = vmatpush.msra.mxu0 0.0
    %478 = vmatpush.msra.mxu0 0.0
    %479 = vmatpush.msra.mxu0 0.0
    %480 = vmatpush.msra.mxu0 0.0
    %481 = vmatpush.msra.mxu0 0.0
    %482 = vmatpush.msra.mxu0 0.0
    %483 = vmatpush.msra.mxu0 0.0
    %484 = vmatpush.msra.mxu0 0.0
    %485 = vmatpush.msra.mxu0 0.0
    %486 = vmatpush.msra.mxu0 0.0
    %487 = vmatpush.msra.mxu0 0.0
    %488 = vmatpush.msra.mxu0 0.0
    %489 = vmatpush.msra.mxu0 %v469
    %490 = vmatmul.f32.gmra.mxu0 %v472
    %v491 = vpop.f32.mrf.mxu0
    %v492 = vadd.f32 0.0, %v491
    %493 = vdwg.mxu0
    %495 = vrot.lane.b32.xlu0 %v492, 16
    %v496 = vpop.permute.xlu0 %495
    %v498 = vsel %vm170, %v412, %v496
    %v499 = vld [vmem:[%s6] sm:$0xff]
    %v500 = vld [vmem:[%s6 + $0x8] sm:$0xff]
    %v501 = vld [vmem:[%s6 + $0x10] sm:$0xff]
    %v502 = vld [vmem:[%s6 + $0x18] sm:$0xff]
    %v503 = vld [vmem:[%s7] sm:$0x1]
    %v505 = vperm.slane %v503, 0
    %v508 = vsel %vm68, %v333, 0
    %v511 = vsel %vm68, %v498, 0
    %513 = vmatpush.msra.mxu0 0.0
    %514 = vmatpush.msra.mxu0 0.0
    %515 = vmatpush.msra.mxu0 0.0
    %516 = vmatpush.msra.mxu0 0.0
    %517 = vmatpush.msra.mxu0 0.0
    %518 = vmatpush.msra.mxu0 0.0
    %519 = vmatpush.msra.mxu0 0.0
    %520 = vmatpush.msra.mxu0 0.0
    %521 = vmatpush.msra.mxu0 0.0
    %522 = vmatpush.msra.mxu0 0.0
    %523 = vmatpush.msra.mxu0 0.0
    %524 = vmatpush.msra.mxu0 0.0
    %525 = vmatpush.msra.mxu0 %v502
    %526 = vmatpush.msra.mxu0 %v501
    %527 = vmatpush.msra.mxu0 %v500
    %528 = vmatpush.msra.mxu0 %v499
    %529 = vmatmul.f32.gmra.mxu0 %v508
    %v530 = vpop.f32.mrf.mxu0
    %v531 = vadd.f32 %v505, %v530
    %532 = vmatmul.f32.gmra.mxu0 %v511
    %v533 = vpop.f32.mrf.mxu0
    %v534 = vadd.f32 %v505, %v533
    %535 = vdwg.mxu0
    %v536 = vadd.f32 %v531, %v128
    %v537 = vadd.f32 %v534, %v129
    %v538 = vld [vmem:[%s8] sm:$0x1]
    %v539 = vld [vmem:[%s9] sm:$0x1]
    %v540 = vsel %vm68, %v536, 0.0
    %541 = vadd.xlane.f32.xlu0 %v540
    %v542 = vpop.xlane.xlu0 %541
    %v543 = vsel %vm68, %v537, 0.0
    %544 = vadd.xlane.f32.xlu0 %v543
    %v545 = vpop.xlane.xlu0 %544
    %v546 = vmul.f32 %v542, %v81
    %v547 = vmul.f32 %v545, %v81
    %v548 = vsub.f32 %v536, %v546
    %v549 = vsub.f32 %v537, %v547
    %v550 = vmul.f32 %v548, %v548
    %v551 = vmul.f32 %v549, %v549
    %v552 = vsel %vm68, %v550, 0.0
    %553 = vadd.xlane.f32.xlu0 %v552
    %v554 = vpop.xlane.xlu0 %553
    %v555 = vsel %vm68, %v551, 0.0
    %556 = vadd.xlane.f32.xlu0 %v555
    %v557 = vpop.xlane.xlu0 %556
    %v558 = vmul.f32 %v554, %v81
    %v559 = vmul.f32 %v557, %v81
    %v560 = vadd.f32 %v558, 1e-12
    %v561 = vadd.f32 %v559, 1e-12
    %v562 = vrsqrt.pop %v560
    %v563 = vmul.f32 %v562, %v560
    %v564 = vmul.f32 %v563, %v562
    %v565 = vmul.f32 0.5, %v564
    %v566 = vsub.f32 1.5, %v565
    %v567 = vmul.f32 %v562, %v566
    %vm568 = vweird.f32 %v560
    %vm569 = vweird.f32 %v562
    %vm570 = vmor %vm568, %vm569
    %v571 = vsel %vm570, %v562, %v567
    %v572 = vrsqrt.pop %v561
    %v573 = vmul.f32 %v572, %v561
    %v574 = vmul.f32 %v573, %v572
    %v575 = vmul.f32 0.5, %v574
    %v576 = vsub.f32 1.5, %v575
    %v577 = vmul.f32 %v572, %v576
    %vm578 = vweird.f32 %v561
    %vm579 = vweird.f32 %v572
    %vm580 = vmor %vm578, %vm579
    %v581 = vsel %vm580, %v572, %v577
    %v582 = vmul.f32 %v548, %v571
    %v583 = vmul.f32 %v549, %v581
    %v585 = vperm.slane %v538, 0
    %v587 = vmul.f32 %v582, %v585
    %v588 = vmul.f32 %v583, %v585
    %v590 = vperm.slane %v539, 0
    %v592 = vadd.f32 %v587, %v590
    %v593 = vadd.f32 %v588, %v590
    %v594 = vld [vmem:[%s10] sm:$0xff]
    %v595 = vld [vmem:[%s10 + $0x8] sm:$0xff]
    %v596 = vld [vmem:[%s10 + $0x10] sm:$0xff]
    %v597 = vld [vmem:[%s10 + $0x18] sm:$0xff]
    %v598 = vld [vmem:[%s11] sm:$0x1]
    %v600 = vperm.slane %v598, 0
    %v603 = vsel %vm68, %v592, 0
    %v606 = vsel %vm68, %v593, 0
    %608 = vmatpush.msra.mxu0 0.0
    %609 = vmatpush.msra.mxu0 0.0
    %610 = vmatpush.msra.mxu0 0.0
    %611 = vmatpush.msra.mxu0 0.0
    %612 = vmatpush.msra.mxu0 0.0
    %613 = vmatpush.msra.mxu0 0.0
    %614 = vmatpush.msra.mxu0 0.0
    %615 = vmatpush.msra.mxu0 0.0
    %616 = vmatpush.msra.mxu0 0.0
    %617 = vmatpush.msra.mxu0 0.0
    %618 = vmatpush.msra.mxu0 0.0
    %619 = vmatpush.msra.mxu0 0.0
    %620 = vmatpush.msra.mxu0 %v597
    %621 = vmatpush.msra.mxu0 %v596
    %622 = vmatpush.msra.mxu0 %v595
    %623 = vmatpush.msra.mxu0 %v594
    %624 = vmatmul.f32.gmra.mxu0 %v603
    %v625 = vpop.f32.mrf.mxu0
    %v626 = vadd.f32 %v600, %v625
    %627 = vmatmul.f32.gmra.mxu0 %v606
    %v628 = vpop.f32.mrf.mxu0
    %v629 = vadd.f32 %v600, %v628
    %630 = vdwg.mxu0
    %v631 = vmul.f32 %v626, 0.5
    %v632 = vmul.f32 %v629, 0.5
    %v633 = vmul.f32 %v626, 0.70710677
    %v634 = vmul.f32 %v629, 0.70710677
    %vm635 = vcmp.ge.f32.partialorder %v633, 0.0
    %vm636 = vcmp.ge.f32.partialorder %v634, 0.0
    %v637 = vsel %vm635, 1.0, -1.0
    %v638 = vsel %vm636, 1.0, -1.0
    %v639 = vand.u32 2147483647, %v633
    %v640 = vand.u32 2147483647, %v634
    %v641 = vmul.f32 %v639, 0.3275911
    %v642 = vmul.f32 %v640, 0.3275911
    %v643 = vadd.f32 %v641, 1.0
    %v644 = vadd.f32 %v642, 1.0
    %v645 = vrcp.pop %v643
    %v646 = vmul.f32 %v643, %v645
    %v647 = vsub.f32 1.0, %v646
    %v648 = vmul.f32 %v645, %v647
    %v649 = vadd.f32 %v645, %v648
    %vm650 = vweird.f32 %v643
    %vm651 = vweird.f32 %v645
    %vm652 = vmor %vm650, %vm651
    %v653 = vsel %vm652, %v645, %v649
    %v654 = vand.u32 2147483647, %v643
    %vm655 = vcmp.eq.f32.partialorder %v654, 8.507059e+37
    %v656 = vand.u32 %v643, 2147483648
    %v657 = vor.u32 1.1754944e-38, %v656
    %v658 = vsel %vm655, %v657, %v653
    %v659 = vmul.f32 1.0, %v658
    %v660 = vrcp.pop %v644
    %v661 = vmul.f32 %v644, %v660
    %v662 = vsub.f32 1.0, %v661
    %v663 = vmul.f32 %v660, %v662
    %v664 = vadd.f32 %v660, %v663
    %vm665 = vweird.f32 %v644
    %vm666 = vweird.f32 %v660
    %vm667 = vmor %vm665, %vm666
    %v668 = vsel %vm667, %v660, %v664
    %v669 = vand.u32 2147483647, %v644
    %vm670 = vcmp.eq.f32.partialorder %v669, 8.507059e+37
    %v671 = vand.u32 %v644, 2147483648
    %v672 = vor.u32 1.1754944e-38, %v671
    %v673 = vsel %vm670, %v672, %v668
    %v674 = vmul.f32 1.0, %v673
    %v675 = vmul.f32 %v659, 1.0614054
    %v676 = vmul.f32 %v674, 1.0614054
    %v677 = vadd.f32 %v675, -1.4531521
    %v678 = vadd.f32 %v676, -1.4531521
    %v679 = vmul.f32 %v677, %v659
    %v680 = vmul.f32 %v678, %v674
    %v681 = vadd.f32 %v679, 1.4214138
    %v682 = vadd.f32 %v680, 1.4214138
    %v683 = vmul.f32 %v681, %v659
    %v684 = vmul.f32 %v682, %v674
    %v685 = vadd.f32 %v683, -0.28449672
    %v686 = vadd.f32 %v684, -0.28449672
    %v687 = vmul.f32 %v685, %v659
    %v688 = vmul.f32 %v686, %v674
    %v689 = vadd.f32 %v687, 0.2548296
    %v690 = vadd.f32 %v688, 0.2548296
    %v691 = vmul.f32 %v689, %v659
    %v692 = vmul.f32 %v690, %v674
    %v693 = vsub.f32 0.0, %v639
    %v694 = vsub.f32 0.0, %v640
    %v695 = vmul.f32 %v693, %v639
    %v696 = vmul.f32 %v694, %v640
    %v697 = vmul.f32 %v695, 1.442695
    %v698 = vpow.pop %v697
    %v699 = vmul.f32 %v696, 1.442695
    %v700 = vpow.pop %v699
    %v701 = vmul.f32 %v691, %v698
    %v702 = vmul.f32 %v692, %v700
    %v703 = vsub.f32 1.0, %v701
    %v704 = vsub.f32 1.0, %v702
    %v705 = vmul.f32 %v637, %v703
    %v706 = vmul.f32 %v638, %v704
    %v707 = vadd.f32 %v705, 1.0
    %v708 = vadd.f32 %v706, 1.0
    %v709 = vmul.f32 %v631, %v707
    %v710 = vmul.f32 %v632, %v708
    %v711 = vld [vmem:[%s12] sm:$0xff]
    %v712 = vld [vmem:[%s12 + $0x8] sm:$0xff]
    %v713 = vld [vmem:[%s12 + $0x10] sm:$0xff]
    %v714 = vld [vmem:[%s12 + $0x18] sm:$0xff]
    %v715 = vld [vmem:[%s12 + $0x20] sm:$0xff]
    %v716 = vld [vmem:[%s12 + $0x28] sm:$0xff]
    %v717 = vld [vmem:[%s12 + $0x30] sm:$0xff]
    %v718 = vld [vmem:[%s12 + $0x38] sm:$0xff]
    %v719 = vld [vmem:[%s13] sm:$0x1]
    %v721 = vperm.slane %v719, 0
    %vm723 = vcmask 523264
    %v725 = vsel %vm723, %v709, 0
    %v728 = vsel %vm723, %v710, 0
    %730 = vmatpush.msra.mxu0 0.0
    %731 = vmatpush.msra.mxu0 0.0
    %732 = vmatpush.msra.mxu0 0.0
    %733 = vmatpush.msra.mxu0 0.0
    %734 = vmatpush.msra.mxu0 0.0
    %735 = vmatpush.msra.mxu0 0.0
    %736 = vmatpush.msra.mxu0 0.0
    %737 = vmatpush.msra.mxu0 0.0
    %738 = vmatpush.msra.mxu0 %v718
    %739 = vmatpush.msra.mxu0 %v717
    %740 = vmatpush.msra.mxu0 %v716
    %741 = vmatpush.msra.mxu0 %v715
    %742 = vmatpush.msra.mxu0 %v714
    %743 = vmatpush.msra.mxu0 %v713
    %744 = vmatpush.msra.mxu0 %v712
    %745 = vmatpush.msra.mxu0 %v711
    %746 = vmatmul.f32.gmra.mxu0 %v725
    %v747 = vpop.f32.mrf.mxu0
    %v748 = vadd.f32 %v721, %v747
    %749 = vmatmul.f32.gmra.mxu0 %v728
    %v750 = vpop.f32.mrf.mxu0
    %v751 = vadd.f32 %v721, %v750
    %752 = vdwg.mxu0
    %v753 = vadd.f32 %v748, %v592
    %v754 = vadd.f32 %v751, %v593
    %v755 = vld [vmem:[%s14] sm:$0x1]
    %v756 = vld [vmem:[%s15] sm:$0x1]
    %v757 = vsel %vm68, %v753, 0.0
    %758 = vadd.xlane.f32.xlu0 %v757
    %v759 = vpop.xlane.xlu0 %758
    %v760 = vsel %vm68, %v754, 0.0
    %761 = vadd.xlane.f32.xlu0 %v760
    %v762 = vpop.xlane.xlu0 %761
    %v763 = vmul.f32 %v759, %v81
    %v764 = vmul.f32 %v762, %v81
    %v765 = vsub.f32 %v753, %v763
    %v766 = vsub.f32 %v754, %v764
    %v767 = vmul.f32 %v765, %v765
    %v768 = vmul.f32 %v766, %v766
    %v769 = vsel %vm68, %v767, 0.0
    %770 = vadd.xlane.f32.xlu0 %v769
    %v771 = vpop.xlane.xlu0 %770
    %v772 = vsel %vm68, %v768, 0.0
    %773 = vadd.xlane.f32.xlu0 %v772
    %v774 = vpop.xlane.xlu0 %773
    %v775 = vmul.f32 %v771, %v81
    %v776 = vmul.f32 %v774, %v81
    %v777 = vadd.f32 %v775, 1e-12
    %v778 = vadd.f32 %v776, 1e-12
    %v779 = vrsqrt.pop %v777
    %v780 = vmul.f32 %v779, %v777
    %v781 = vmul.f32 %v780, %v779
    %v782 = vmul.f32 0.5, %v781
    %v783 = vsub.f32 1.5, %v782
    %v784 = vmul.f32 %v779, %v783
    %vm785 = vweird.f32 %v777
    %vm786 = vweird.f32 %v779
    %vm787 = vmor %vm785, %vm786
    %v788 = vsel %vm787, %v779, %v784
    %v789 = vrsqrt.pop %v778
    %v790 = vmul.f32 %v789, %v778
    %v791 = vmul.f32 %v790, %v789
    %v792 = vmul.f32 0.5, %v791
    %v793 = vsub.f32 1.5, %v792
    %v794 = vmul.f32 %v789, %v793
    %vm795 = vweird.f32 %v778
    %vm796 = vweird.f32 %v789
    %vm797 = vmor %vm795, %vm796
    %v798 = vsel %vm797, %v789, %v794
    %v799 = vmul.f32 %v765, %v788
    %v800 = vmul.f32 %v766, %v798
    %v802 = vperm.slane %v755, 0
    %v804 = vmul.f32 %v799, %v802
    %v805 = vmul.f32 %v800, %v802
    %v807 = vperm.slane %v756, 0
    %v809 = vadd.f32 %v804, %v807
    %v810 = vadd.f32 %v805, %v807
    %s811 = scalar_lea.vmem %s4, 32
    %v812 = vld [vmem:[%s811] sm:$0xff]
    %v813 = vld [vmem:[%s811 + $0x8] sm:$0xff]
    %v814 = vld [vmem:[%s811 + $0x10] sm:$0xff]
    %v815 = vld [vmem:[%s811 + $0x18] sm:$0xff]
    %s816 = scalar_lea.vmem %s5, 1
    %v817 = vld [vmem:[%s816] sm:$0x1]
    %v819 = vperm.slane %v817, 0
    %v822 = vsel %vm68, %v809, 0
    %v825 = vsel %vm68, %v810, 0
    %827 = vmatpush.msra.mxu0 0.0
    %828 = vmatpush.msra.mxu0 0.0
    %829 = vmatpush.msra.mxu0 0.0
    %830 = vmatpush.msra.mxu0 0.0
    %831 = vmatpush.msra.mxu0 0.0
    %832 = vmatpush.msra.mxu0 0.0
    %833 = vmatpush.msra.mxu0 0.0
    %834 = vmatpush.msra.mxu0 0.0
    %835 = vmatpush.msra.mxu0 0.0
    %836 = vmatpush.msra.mxu0 0.0
    %837 = vmatpush.msra.mxu0 0.0
    %838 = vmatpush.msra.mxu0 0.0
    %839 = vmatpush.msra.mxu0 %v815
    %840 = vmatpush.msra.mxu0 %v814
    %841 = vmatpush.msra.mxu0 %v813
    %842 = vmatpush.msra.mxu0 %v812
    %843 = vmatmul.f32.gmra.mxu0 %v822
    %v844 = vpop.f32.mrf.mxu0
    %v845 = vadd.f32 %v819, %v844
    %846 = vmatmul.f32.gmra.mxu0 %v825
    %v847 = vpop.f32.mrf.mxu0
    %v848 = vadd.f32 %v819, %v847
    %849 = vdwg.mxu0
    %851 = vrot.lane.b32.xlu0 %v845, 96
    %v852 = vpop.permute.xlu0 %851
    %v853 = vsel %vm170, %v845, 0
    %v855 = vsel %vm170, %v852, 0
    %857 = vmatpush.xpose.msra.mxu0 0.0
    %858 = vmatpush.xpose.msra.mxu0 0.0
    %859 = vmatpush.xpose.msra.mxu0 0.0
    %860 = vmatpush.xpose.msra.mxu0 0.0
    %861 = vmatpush.xpose.msra.mxu0 0.0
    %862 = vmatpush.xpose.msra.mxu0 0.0
    %863 = vmatpush.xpose.msra.mxu0 0.0
    %864 = vmatpush.xpose.msra.mxu0 0.0
    %865 = vmatpush.xpose.msra.mxu0 0.0
    %866 = vmatpush.xpose.msra.mxu0 0.0
    %867 = vmatpush.xpose.msra.mxu0 0.0
    %868 = vmatpush.xpose.msra.mxu0 0.0
    %869 = vmatpush.xpose.msra.mxu0 0.0
    %870 = vmatpush.xpose.msra.mxu0 0.0
    %871 = vmatpush.xpose.msra.mxu0 0.0
    %872 = vmatpush.xpose.msra.mxu0 %v855
    %873 = vmatmul.f32.gmra.mxu0 %v853
    %v874 = vpop.f32.mrf.mxu0
    %v875 = vadd.f32 0.0, %v874
    %876 = vdwg.mxu0
    %v877 = vmul.f32 %v875, 0.25
    %v878 = vadd.f32 %v877, %v196
    %v879 = vsel %vm198, %v878, -inf
    %880 = vmax.xlane.f32.xlu0 %v879
    %v881 = vpop.xlane.xlu0 %880
    %v882 = vsub.f32 %v878, %v881
    %v883 = vmul.f32 %v882, 1.442695
    %v884 = vpow.pop %v883
    %v885 = vsel %vm198, %v884, 0.0
    %886 = vadd.xlane.f32.xlu0 %v885
    %v887 = vpop.xlane.xlu0 %886
    %v888 = vrcp.pop %v887
    %v889 = vmul.f32 %v887, %v888
    %v890 = vsub.f32 1.0, %v889
    %v891 = vmul.f32 %v888, %v890
    %v892 = vadd.f32 %v888, %v891
    %vm893 = vweird.f32 %v887
    %vm894 = vweird.f32 %v888
    %vm895 = vmor %vm893, %vm894
    %v896 = vsel %vm895, %v888, %v892
    %v897 = vand.u32 2147483647, %v887
    %vm898 = vcmp.eq.f32.partialorder %v897, 8.507059e+37
    %v899 = vand.u32 %v887, 2147483648
    %v900 = vor.u32 1.1754944e-38, %v899
    %v901 = vsel %vm898, %v900, %v896
    %v902 = vmul.f32 %v884, %v901
    %903 = vrot.lane.b32.xlu0 %v845, 64
    %v904 = vpop.permute.xlu0 %903
    %v907 = vsel %vm198, %v902, 0
    %909 = vmatpush.msra.mxu0 0.0
    %910 = vmatpush.msra.mxu0 0.0
    %911 = vmatpush.msra.mxu0 0.0
    %912 = vmatpush.msra.mxu0 0.0
    %913 = vmatpush.msra.mxu0 0.0
    %914 = vmatpush.msra.mxu0 0.0
    %915 = vmatpush.msra.mxu0 0.0
    %916 = vmatpush.msra.mxu0 0.0
    %917 = vmatpush.msra.mxu0 0.0
    %918 = vmatpush.msra.mxu0 0.0
    %919 = vmatpush.msra.mxu0 0.0
    %920 = vmatpush.msra.mxu0 0.0
    %921 = vmatpush.msra.mxu0 0.0
    %922 = vmatpush.msra.mxu0 0.0
    %923 = vmatpush.msra.mxu0 0.0
    %924 = vmatpush.msra.mxu0 %v904
    %925 = vmatmul.f32.gmra.mxu0 %v907
    %v926 = vpop.f32.mrf.mxu0
    %v927 = vadd.f32 0.0, %v926
    %928 = vdwg.mxu0
    %929 = vrot.lane.b32.xlu0 %v845, 112
    %v930 = vpop.permute.xlu0 %929
    %931 = vrot.lane.b32.xlu0 %v845, 80
    %v932 = vpop.permute.xlu0 %931
    %v933 = vsel %vm170, %v930, 0
    %v935 = vsel %vm170, %v932, 0
    %937 = vmatpush.xpose.msra.mxu0 0.0
    %938 = vmatpush.xpose.msra.mxu0 0.0
    %939 = vmatpush.xpose.msra.mxu0 0.0
    %940 = vmatpush.xpose.msra.mxu0 0.0
    %941 = vmatpush.xpose.msra.mxu0 0.0
    %942 = vmatpush.xpose.msra.mxu0 0.0
    %943 = vmatpush.xpose.msra.mxu0 0.0
    %944 = vmatpush.xpose.msra.mxu0 0.0
    %945 = vmatpush.xpose.msra.mxu0 0.0
    %946 = vmatpush.xpose.msra.mxu0 0.0
    %947 = vmatpush.xpose.msra.mxu0 0.0
    %948 = vmatpush.xpose.msra.mxu0 0.0
    %949 = vmatpush.xpose.msra.mxu0 0.0
    %950 = vmatpush.xpose.msra.mxu0 0.0
    %951 = vmatpush.xpose.msra.mxu0 0.0
    %952 = vmatpush.xpose.msra.mxu0 %v935
    %953 = vmatmul.f32.gmra.mxu0 %v933
    %v954 = vpop.f32.mrf.mxu0
    %v955 = vadd.f32 0.0, %v954
    %956 = vdwg.mxu0
    %v957 = vmul.f32 %v955, 0.25
    %v958 = vadd.f32 %v957, %v196
    %v959 = vsel %vm198, %v958, -inf
    %960 = vmax.xlane.f32.xlu0 %v959
    %v961 = vpop.xlane.xlu0 %960
    %v962 = vsub.f32 %v958, %v961
    %v963 = vmul.f32 %v962, 1.442695
    %v964 = vpow.pop %v963
    %v965 = vsel %vm198, %v964, 0.0
    %966 = vadd.xlane.f32.xlu0 %v965
    %v967 = vpop.xlane.xlu0 %966
    %v968 = vrcp.pop %v967
    %v969 = vmul.f32 %v967, %v968
    %v970 = vsub.f32 1.0, %v969
    %v971 = vmul.f32 %v968, %v970
    %v972 = vadd.f32 %v968, %v971
    %vm973 = vweird.f32 %v967
    %vm974 = vweird.f32 %v968
    %vm975 = vmor %vm973, %vm974
    %v976 = vsel %vm975, %v968, %v972
    %v977 = vand.u32 2147483647, %v967
    %vm978 = vcmp.eq.f32.partialorder %v977, 8.507059e+37
    %v979 = vand.u32 %v967, 2147483648
    %v980 = vor.u32 1.1754944e-38, %v979
    %v981 = vsel %vm978, %v980, %v976
    %v982 = vmul.f32 %v964, %v981
    %983 = vrot.lane.b32.xlu0 %v845, 48
    %v984 = vpop.permute.xlu0 %983
    %v987 = vsel %vm198, %v982, 0
    %989 = vmatpush.msra.mxu0 0.0
    %990 = vmatpush.msra.mxu0 0.0
    %991 = vmatpush.msra.mxu0 0.0
    %992 = vmatpush.msra.mxu0 0.0
    %993 = vmatpush.msra.mxu0 0.0
    %994 = vmatpush.msra.mxu0 0.0
    %995 = vmatpush.msra.mxu0 0.0
    %996 = vmatpush.msra.mxu0 0.0
    %997 = vmatpush.msra.mxu0 0.0
    %998 = vmatpush.msra.mxu0 0.0
    %999 = vmatpush.msra.mxu0 0.0
    %1000 = vmatpush.msra.mxu0 0.0
    %1001 = vmatpush.msra.mxu0 0.0
    %1002 = vmatpush.msra.mxu0 0.0
    %1003 = vmatpush.msra.mxu0 0.0
    %1004 = vmatpush.msra.mxu0 %v984
    %1005 = vmatmul.f32.gmra.mxu0 %v987
    %v1006 = vpop.f32.mrf.mxu0
    %v1007 = vadd.f32 0.0, %v1006
    %1008 = vdwg.mxu0
    %1010 = vrot.lane.b32.xlu0 %v1007, 16
    %v1011 = vpop.permute.xlu0 %1010
    %v1013 = vsel %vm170, %v927, %v1011
    %1015 = vrot.lane.b32.xlu0 %v848, 96
    %v1016 = vpop.permute.xlu0 %1015
    %v1017 = vsel %vm170, %v848, 0
    %v1019 = vsel %vm170, %v1016, 0
    %1021 = vmatpush.xpose.msra.mxu0 0.0
    %1022 = vmatpush.xpose.msra.mxu0 0.0
    %1023 = vmatpush.xpose.msra.mxu0 0.0
    %1024 = vmatpush.xpose.msra.mxu0 0.0
    %1025 = vmatpush.xpose.msra.mxu0 0.0
    %1026 = vmatpush.xpose.msra.mxu0 0.0
    %1027 = vmatpush.xpose.msra.mxu0 0.0
    %1028 = vmatpush.xpose.msra.mxu0 0.0
    %1029 = vmatpush.xpose.msra.mxu0 0.0
    %1030 = vmatpush.xpose.msra.mxu0 0.0
    %1031 = vmatpush.xpose.msra.mxu0 0.0
    %1032 = vmatpush.xpose.msra.mxu0 0.0
    %1033 = vmatpush.xpose.msra.mxu0 0.0
    %1034 = vmatpush.xpose.msra.mxu0 0.0
    %1035 = vmatpush.xpose.msra.mxu0 0.0
    %1036 = vmatpush.xpose.msra.mxu0 %v1019
    %1037 = vmatmul.f32.gmra.mxu0 %v1017
    %v1038 = vpop.f32.mrf.mxu0
    %v1039 = vadd.f32 0.0, %v1038
    %1040 = vdwg.mxu0
    %v1041 = vmul.f32 %v1039, 0.25
    %v1042 = vadd.f32 %v1041, %v362
    %v1043 = vsel %vm198, %v1042, -inf
    %1044 = vmax.xlane.f32.xlu0 %v1043
    %v1045 = vpop.xlane.xlu0 %1044
    %v1046 = vsub.f32 %v1042, %v1045
    %v1047 = vmul.f32 %v1046, 1.442695
    %v1048 = vpow.pop %v1047
    %v1049 = vsel %vm198, %v1048, 0.0
    %1050 = vadd.xlane.f32.xlu0 %v1049
    %v1051 = vpop.xlane.xlu0 %1050
    %v1052 = vrcp.pop %v1051
    %v1053 = vmul.f32 %v1051, %v1052
    %v1054 = vsub.f32 1.0, %v1053
    %v1055 = vmul.f32 %v1052, %v1054
    %v1056 = vadd.f32 %v1052, %v1055
    %vm1057 = vweird.f32 %v1051
    %vm1058 = vweird.f32 %v1052
    %vm1059 = vmor %vm1057, %vm1058
    %v1060 = vsel %vm1059, %v1052, %v1056
    %v1061 = vand.u32 2147483647, %v1051
    %vm1062 = vcmp.eq.f32.partialorder %v1061, 8.507059e+37
    %v1063 = vand.u32 %v1051, 2147483648
    %v1064 = vor.u32 1.1754944e-38, %v1063
    %v1065 = vsel %vm1062, %v1064, %v1060
    %v1066 = vmul.f32 %v1048, %v1065
    %1067 = vrot.lane.b32.xlu0 %v848, 64
    %v1068 = vpop.permute.xlu0 %1067
    %v1071 = vsel %vm198, %v1066, 0
    %1073 = vmatpush.msra.mxu0 0.0
    %1074 = vmatpush.msra.mxu0 0.0
    %1075 = vmatpush.msra.mxu0 0.0
    %1076 = vmatpush.msra.mxu0 0.0
    %1077 = vmatpush.msra.mxu0 0.0
    %1078 = vmatpush.msra.mxu0 0.0
    %1079 = vmatpush.msra.mxu0 0.0
    %1080 = vmatpush.msra.mxu0 0.0
    %1081 = vmatpush.msra.mxu0 0.0
    %1082 = vmatpush.msra.mxu0 0.0
    %1083 = vmatpush.msra.mxu0 0.0
    %1084 = vmatpush.msra.mxu0 0.0
    %1085 = vmatpush.msra.mxu0 0.0
    %1086 = vmatpush.msra.mxu0 0.0
    %1087 = vmatpush.msra.mxu0 0.0
    %1088 = vmatpush.msra.mxu0 %v1068
    %1089 = vmatmul.f32.gmra.mxu0 %v1071
    %v1090 = vpop.f32.mrf.mxu0
    %v1091 = vadd.f32 0.0, %v1090
    %1092 = vdwg.mxu0
    %1093 = vrot.lane.b32.xlu0 %v848, 112
    %v1094 = vpop.permute.xlu0 %1093
    %1095 = vrot.lane.b32.xlu0 %v848, 80
    %v1096 = vpop.permute.xlu0 %1095
    %v1097 = vsel %vm170, %v1094, 0
    %v1099 = vsel %vm170, %v1096, 0
    %1101 = vmatpush.xpose.msra.mxu0 0.0
    %1102 = vmatpush.xpose.msra.mxu0 0.0
    %1103 = vmatpush.xpose.msra.mxu0 0.0
    %1104 = vmatpush.xpose.msra.mxu0 0.0
    %1105 = vmatpush.xpose.msra.mxu0 0.0
    %1106 = vmatpush.xpose.msra.mxu0 0.0
    %1107 = vmatpush.xpose.msra.mxu0 0.0
    %1108 = vmatpush.xpose.msra.mxu0 0.0
    %1109 = vmatpush.xpose.msra.mxu0 0.0
    %1110 = vmatpush.xpose.msra.mxu0 0.0
    %1111 = vmatpush.xpose.msra.mxu0 0.0
    %1112 = vmatpush.xpose.msra.mxu0 0.0
    %1113 = vmatpush.xpose.msra.mxu0 0.0
    %1114 = vmatpush.xpose.msra.mxu0 0.0
    %1115 = vmatpush.xpose.msra.mxu0 0.0
    %1116 = vmatpush.xpose.msra.mxu0 %v1099
    %1117 = vmatmul.f32.gmra.mxu0 %v1097
    %v1118 = vpop.f32.mrf.mxu0
    %v1119 = vadd.f32 0.0, %v1118
    %1120 = vdwg.mxu0
    %v1121 = vmul.f32 %v1119, 0.25
    %v1122 = vadd.f32 %v1121, %v362
    %v1123 = vsel %vm198, %v1122, -inf
    %1124 = vmax.xlane.f32.xlu0 %v1123
    %v1125 = vpop.xlane.xlu0 %1124
    %v1126 = vsub.f32 %v1122, %v1125
    %v1127 = vmul.f32 %v1126, 1.442695
    %v1128 = vpow.pop %v1127
    %v1129 = vsel %vm198, %v1128, 0.0
    %1130 = vadd.xlane.f32.xlu0 %v1129
    %v1131 = vpop.xlane.xlu0 %1130
    %v1132 = vrcp.pop %v1131
    %v1133 = vmul.f32 %v1131, %v1132
    %v1134 = vsub.f32 1.0, %v1133
    %v1135 = vmul.f32 %v1132, %v1134
    %v1136 = vadd.f32 %v1132, %v1135
    %vm1137 = vweird.f32 %v1131
    %vm1138 = vweird.f32 %v1132
    %vm1139 = vmor %vm1137, %vm1138
    %v1140 = vsel %vm1139, %v1132, %v1136
    %v1141 = vand.u32 2147483647, %v1131
    %vm1142 = vcmp.eq.f32.partialorder %v1141, 8.507059e+37
    %v1143 = vand.u32 %v1131, 2147483648
    %v1144 = vor.u32 1.1754944e-38, %v1143
    %v1145 = vsel %vm1142, %v1144, %v1140
    %v1146 = vmul.f32 %v1128, %v1145
    %1147 = vrot.lane.b32.xlu0 %v848, 48
    %v1148 = vpop.permute.xlu0 %1147
    %v1151 = vsel %vm198, %v1146, 0
    %1153 = vmatpush.msra.mxu0 0.0
    %1154 = vmatpush.msra.mxu0 0.0
    %1155 = vmatpush.msra.mxu0 0.0
    %1156 = vmatpush.msra.mxu0 0.0
    %1157 = vmatpush.msra.mxu0 0.0
    %1158 = vmatpush.msra.mxu0 0.0
    %1159 = vmatpush.msra.mxu0 0.0
    %1160 = vmatpush.msra.mxu0 0.0
    %1161 = vmatpush.msra.mxu0 0.0
    %1162 = vmatpush.msra.mxu0 0.0
    %1163 = vmatpush.msra.mxu0 0.0
    %1164 = vmatpush.msra.mxu0 0.0
    %1165 = vmatpush.msra.mxu0 0.0
    %1166 = vmatpush.msra.mxu0 0.0
    %1167 = vmatpush.msra.mxu0 0.0
    %1168 = vmatpush.msra.mxu0 %v1148
    %1169 = vmatmul.f32.gmra.mxu0 %v1151
    %v1170 = vpop.f32.mrf.mxu0
    %v1171 = vadd.f32 0.0, %v1170
    %1172 = vdwg.mxu0
    %1174 = vrot.lane.b32.xlu0 %v1171, 16
    %v1175 = vpop.permute.xlu0 %1174
    %v1177 = vsel %vm170, %v1091, %v1175
    %s1178 = scalar_lea.vmem %s6, 32
    %v1179 = vld [vmem:[%s1178] sm:$0xff]
    %v1180 = vld [vmem:[%s1178 + $0x8] sm:$0xff]
    %v1181 = vld [vmem:[%s1178 + $0x10] sm:$0xff]
    %v1182 = vld [vmem:[%s1178 + $0x18] sm:$0xff]
    %s1183 = scalar_lea.vmem %s7, 1
    %v1184 = vld [vmem:[%s1183] sm:$0x1]
    %v1186 = vperm.slane %v1184, 0
    %v1189 = vsel %vm68, %v1013, 0
    %v1192 = vsel %vm68, %v1177, 0
    %1194 = vmatpush.msra.mxu0 0.0
    %1195 = vmatpush.msra.mxu0 0.0
    %1196 = vmatpush.msra.mxu0 0.0
    %1197 = vmatpush.msra.mxu0 0.0
    %1198 = vmatpush.msra.mxu0 0.0
    %1199 = vmatpush.msra.mxu0 0.0
    %1200 = vmatpush.msra.mxu0 0.0
    %1201 = vmatpush.msra.mxu0 0.0
    %1202 = vmatpush.msra.mxu0 0.0
    %1203 = vmatpush.msra.mxu0 0.0
    %1204 = vmatpush.msra.mxu0 0.0
    %1205 = vmatpush.msra.mxu0 0.0
    %1206 = vmatpush.msra.mxu0 %v1182
    %1207 = vmatpush.msra.mxu0 %v1181
    %1208 = vmatpush.msra.mxu0 %v1180
    %1209 = vmatpush.msra.mxu0 %v1179
    %1210 = vmatmul.f32.gmra.mxu0 %v1189
    %v1211 = vpop.f32.mrf.mxu0
    %v1212 = vadd.f32 %v1186, %v1211
    %1213 = vmatmul.f32.gmra.mxu0 %v1192
    %v1214 = vpop.f32.mrf.mxu0
    %v1215 = vadd.f32 %v1186, %v1214
    %1216 = vdwg.mxu0
    %v1217 = vadd.f32 %v1212, %v809
    %v1218 = vadd.f32 %v1215, %v810
    %s1219 = scalar_lea.vmem %s8, 1
    %v1220 = vld [vmem:[%s1219] sm:$0x1]
    %s1221 = scalar_lea.vmem %s9, 1
    %v1222 = vld [vmem:[%s1221] sm:$0x1]
    %v1223 = vsel %vm68, %v1217, 0.0
    %1224 = vadd.xlane.f32.xlu0 %v1223
    %v1225 = vpop.xlane.xlu0 %1224
    %v1226 = vsel %vm68, %v1218, 0.0
    %1227 = vadd.xlane.f32.xlu0 %v1226
    %v1228 = vpop.xlane.xlu0 %1227
    %v1229 = vmul.f32 %v1225, %v81
    %v1230 = vmul.f32 %v1228, %v81
    %v1231 = vsub.f32 %v1217, %v1229
    %v1232 = vsub.f32 %v1218, %v1230
    %v1233 = vmul.f32 %v1231, %v1231
    %v1234 = vmul.f32 %v1232, %v1232
    %v1235 = vsel %vm68, %v1233, 0.0
    %1236 = vadd.xlane.f32.xlu0 %v1235
    %v1237 = vpop.xlane.xlu0 %1236
    %v1238 = vsel %vm68, %v1234, 0.0
    %1239 = vadd.xlane.f32.xlu0 %v1238
    %v1240 = vpop.xlane.xlu0 %1239
    %v1241 = vmul.f32 %v1237, %v81
    %v1242 = vmul.f32 %v1240, %v81
    %v1243 = vadd.f32 %v1241, 1e-12
    %v1244 = vadd.f32 %v1242, 1e-12
    %v1245 = vrsqrt.pop %v1243
    %v1246 = vmul.f32 %v1245, %v1243
    %v1247 = vmul.f32 %v1246, %v1245
    %v1248 = vmul.f32 0.5, %v1247
    %v1249 = vsub.f32 1.5, %v1248
    %v1250 = vmul.f32 %v1245, %v1249
    %vm1251 = vweird.f32 %v1243
    %vm1252 = vweird.f32 %v1245
    %vm1253 = vmor %vm1251, %vm1252
    %v1254 = vsel %vm1253, %v1245, %v1250
    %v1255 = vrsqrt.pop %v1244
    %v1256 = vmul.f32 %v1255, %v1244
    %v1257 = vmul.f32 %v1256, %v1255
    %v1258 = vmul.f32 0.5, %v1257
    %v1259 = vsub.f32 1.5, %v1258
    %v1260 = vmul.f32 %v1255, %v1259
    %vm1261 = vweird.f32 %v1244
    %vm1262 = vweird.f32 %v1255
    %vm1263 = vmor %vm1261, %vm1262
    %v1264 = vsel %vm1263, %v1255, %v1260
    %v1265 = vmul.f32 %v1231, %v1254
    %v1266 = vmul.f32 %v1232, %v1264
    %v1268 = vperm.slane %v1220, 0
    %v1270 = vmul.f32 %v1265, %v1268
    %v1271 = vmul.f32 %v1266, %v1268
    %v1273 = vperm.slane %v1222, 0
    %v1275 = vadd.f32 %v1270, %v1273
    %v1276 = vadd.f32 %v1271, %v1273
    %s1277 = scalar_lea.vmem %s10, 32
    %v1278 = vld [vmem:[%s1277] sm:$0xff]
    %v1279 = vld [vmem:[%s1277 + $0x8] sm:$0xff]
    %v1280 = vld [vmem:[%s1277 + $0x10] sm:$0xff]
    %v1281 = vld [vmem:[%s1277 + $0x18] sm:$0xff]
    %s1282 = scalar_lea.vmem %s11, 1
    %v1283 = vld [vmem:[%s1282] sm:$0x1]
    %v1285 = vperm.slane %v1283, 0
    %v1288 = vsel %vm68, %v1275, 0
    %v1291 = vsel %vm68, %v1276, 0
    %1293 = vmatpush.msra.mxu0 0.0
    %1294 = vmatpush.msra.mxu0 0.0
    %1295 = vmatpush.msra.mxu0 0.0
    %1296 = vmatpush.msra.mxu0 0.0
    %1297 = vmatpush.msra.mxu0 0.0
    %1298 = vmatpush.msra.mxu0 0.0
    %1299 = vmatpush.msra.mxu0 0.0
    %1300 = vmatpush.msra.mxu0 0.0
    %1301 = vmatpush.msra.mxu0 0.0
    %1302 = vmatpush.msra.mxu0 0.0
    %1303 = vmatpush.msra.mxu0 0.0
    %1304 = vmatpush.msra.mxu0 0.0
    %1305 = vmatpush.msra.mxu0 %v1281
    %1306 = vmatpush.msra.mxu0 %v1280
    %1307 = vmatpush.msra.mxu0 %v1279
    %1308 = vmatpush.msra.mxu0 %v1278
    %1309 = vmatmul.f32.gmra.mxu0 %v1288
    %v1310 = vpop.f32.mrf.mxu0
    %v1311 = vadd.f32 %v1285, %v1310
    %1312 = vmatmul.f32.gmra.mxu0 %v1291
    %v1313 = vpop.f32.mrf.mxu0
    %v1314 = vadd.f32 %v1285, %v1313
    %1315 = vdwg.mxu0
    %v1316 = vmul.f32 %v1311, 0.5
    %v1317 = vmul.f32 %v1314, 0.5
    %v1318 = vmul.f32 %v1311, 0.70710677
    %v1319 = vmul.f32 %v1314, 0.70710677
    %vm1320 = vcmp.ge.f32.partialorder %v1318, 0.0
    %vm1321 = vcmp.ge.f32.partialorder %v1319, 0.0
    %v1322 = vsel %vm1320, 1.0, -1.0
    %v1323 = vsel %vm1321, 1.0, -1.0
    %v1324 = vand.u32 2147483647, %v1318
    %v1325 = vand.u32 2147483647, %v1319
    %v1326 = vmul.f32 %v1324, 0.3275911
    %v1327 = vmul.f32 %v1325, 0.3275911
    %v1328 = vadd.f32 %v1326, 1.0
    %v1329 = vadd.f32 %v1327, 1.0
    %v1330 = vrcp.pop %v1328
    %v1331 = vmul.f32 %v1328, %v1330
    %v1332 = vsub.f32 1.0, %v1331
    %v1333 = vmul.f32 %v1330, %v1332
    %v1334 = vadd.f32 %v1330, %v1333
    %vm1335 = vweird.f32 %v1328
    %vm1336 = vweird.f32 %v1330
    %vm1337 = vmor %vm1335, %vm1336
    %v1338 = vsel %vm1337, %v1330, %v1334
    %v1339 = vand.u32 2147483647, %v1328
    %vm1340 = vcmp.eq.f32.partialorder %v1339, 8.507059e+37
    %v1341 = vand.u32 %v1328, 2147483648
    %v1342 = vor.u32 1.1754944e-38, %v1341
    %v1343 = vsel %vm1340, %v1342, %v1338
    %v1344 = vmul.f32 1.0, %v1343
    %v1345 = vrcp.pop %v1329
    %v1346 = vmul.f32 %v1329, %v1345
    %v1347 = vsub.f32 1.0, %v1346
    %v1348 = vmul.f32 %v1345, %v1347
    %v1349 = vadd.f32 %v1345, %v1348
    %vm1350 = vweird.f32 %v1329
    %vm1351 = vweird.f32 %v1345
    %vm1352 = vmor %vm1350, %vm1351
    %v1353 = vsel %vm1352, %v1345, %v1349
    %v1354 = vand.u32 2147483647, %v1329
    %vm1355 = vcmp.eq.f32.partialorder %v1354, 8.507059e+37
    %v1356 = vand.u32 %v1329, 2147483648
    %v1357 = vor.u32 1.1754944e-38, %v1356
    %v1358 = vsel %vm1355, %v1357, %v1353
    %v1359 = vmul.f32 1.0, %v1358
    %v1360 = vmul.f32 %v1344, 1.0614054
    %v1361 = vmul.f32 %v1359, 1.0614054
    %v1362 = vadd.f32 %v1360, -1.4531521
    %v1363 = vadd.f32 %v1361, -1.4531521
    %v1364 = vmul.f32 %v1362, %v1344
    %v1365 = vmul.f32 %v1363, %v1359
    %v1366 = vadd.f32 %v1364, 1.4214138
    %v1367 = vadd.f32 %v1365, 1.4214138
    %v1368 = vmul.f32 %v1366, %v1344
    %v1369 = vmul.f32 %v1367, %v1359
    %v1370 = vadd.f32 %v1368, -0.28449672
    %v1371 = vadd.f32 %v1369, -0.28449672
    %v1372 = vmul.f32 %v1370, %v1344
    %v1373 = vmul.f32 %v1371, %v1359
    %v1374 = vadd.f32 %v1372, 0.2548296
    %v1375 = vadd.f32 %v1373, 0.2548296
    %v1376 = vmul.f32 %v1374, %v1344
    %v1377 = vmul.f32 %v1375, %v1359
    %v1378 = vsub.f32 0.0, %v1324
    %v1379 = vsub.f32 0.0, %v1325
    %v1380 = vmul.f32 %v1378, %v1324
    %v1381 = vmul.f32 %v1379, %v1325
    %v1382 = vmul.f32 %v1380, 1.442695
    %v1383 = vpow.pop %v1382
    %v1384 = vmul.f32 %v1381, 1.442695
    %v1385 = vpow.pop %v1384
    %v1386 = vmul.f32 %v1376, %v1383
    %v1387 = vmul.f32 %v1377, %v1385
    %v1388 = vsub.f32 1.0, %v1386
    %v1389 = vsub.f32 1.0, %v1387
    %v1390 = vmul.f32 %v1322, %v1388
    %v1391 = vmul.f32 %v1323, %v1389
    %v1392 = vadd.f32 %v1390, 1.0
    %v1393 = vadd.f32 %v1391, 1.0
    %v1394 = vmul.f32 %v1316, %v1392
    %v1395 = vmul.f32 %v1317, %v1393
    %s1396 = scalar_lea.vmem %s12, 64
    %v1397 = vld [vmem:[%s1396] sm:$0xff]
    %v1398 = vld [vmem:[%s1396 + $0x8] sm:$0xff]
    %v1399 = vld [vmem:[%s1396 + $0x10] sm:$0xff]
    %v1400 = vld [vmem:[%s1396 + $0x18] sm:$0xff]
    %v1401 = vld [vmem:[%s1396 + $0x20] sm:$0xff]
    %v1402 = vld [vmem:[%s1396 + $0x28] sm:$0xff]
    %v1403 = vld [vmem:[%s1396 + $0x30] sm:$0xff]
    %v1404 = vld [vmem:[%s1396 + $0x38] sm:$0xff]
    %s1405 = scalar_lea.vmem %s13, 1
    %v1406 = vld [vmem:[%s1405] sm:$0x1]
    %v1408 = vperm.slane %v1406, 0
    %v1411 = vsel %vm723, %v1394, 0
    %v1414 = vsel %vm723, %v1395, 0
    %1416 = vmatpush.msra.mxu0 0.0
    %1417 = vmatpush.msra.mxu0 0.0
    %1418 = vmatpush.msra.mxu0 0.0
    %1419 = vmatpush.msra.mxu0 0.0
    %1420 = vmatpush.msra.mxu0 0.0
    %1421 = vmatpush.msra.mxu0 0.0
    %1422 = vmatpush.msra.mxu0 0.0
    %1423 = vmatpush.msra.mxu0 0.0
    %1424 = vmatpush.msra.mxu0 %v1404
    %1425 = vmatpush.msra.mxu0 %v1403
    %1426 = vmatpush.msra.mxu0 %v1402
    %1427 = vmatpush.msra.mxu0 %v1401
    %1428 = vmatpush.msra.mxu0 %v1400
    %1429 = vmatpush.msra.mxu0 %v1399
    %1430 = vmatpush.msra.mxu0 %v1398
    %1431 = vmatpush.msra.mxu0 %v1397
    %1432 = vmatmul.f32.gmra.mxu0 %v1411
    %v1433 = vpop.f32.mrf.mxu0
    %v1434 = vadd.f32 %v1408, %v1433
    %1435 = vmatmul.f32.gmra.mxu0 %v1414
    %v1436 = vpop.f32.mrf.mxu0
    %v1437 = vadd.f32 %v1408, %v1436
    %1438 = vdwg.mxu0
    %v1439 = vadd.f32 %v1434, %v1275
    %v1440 = vadd.f32 %v1437, %v1276
    %s1441 = scalar_lea.vmem %s14, 1
    %v1442 = vld [vmem:[%s1441] sm:$0x1]
    %s1443 = scalar_lea.vmem %s15, 1
    %v1444 = vld [vmem:[%s1443] sm:$0x1]
    %v1445 = vsel %vm68, %v1439, 0.0
    %1446 = vadd.xlane.f32.xlu0 %v1445
    %v1447 = vpop.xlane.xlu0 %1446
    %v1448 = vsel %vm68, %v1440, 0.0
    %1449 = vadd.xlane.f32.xlu0 %v1448
    %v1450 = vpop.xlane.xlu0 %1449
    %v1451 = vmul.f32 %v1447, %v81
    %v1452 = vmul.f32 %v1450, %v81
    %v1453 = vsub.f32 %v1439, %v1451
    %v1454 = vsub.f32 %v1440, %v1452
    %v1455 = vmul.f32 %v1453, %v1453
    %v1456 = vmul.f32 %v1454, %v1454
    %v1457 = vsel %vm68, %v1455, 0.0
    %1458 = vadd.xlane.f32.xlu0 %v1457
    %v1459 = vpop.xlane.xlu0 %1458
    %v1460 = vsel %vm68, %v1456, 0.0
    %1461 = vadd.xlane.f32.xlu0 %v1460
    %v1462 = vpop.xlane.xlu0 %1461
    %v1463 = vmul.f32 %v1459, %v81
    %v1464 = vmul.f32 %v1462, %v81
    %v1465 = vadd.f32 %v1463, 1e-12
    %v1466 = vadd.f32 %v1464, 1e-12
    %v1467 = vrsqrt.pop %v1465
    %v1468 = vmul.f32 %v1467, %v1465
    %v1469 = vmul.f32 %v1468, %v1467
    %v1470 = vmul.f32 0.5, %v1469
    %v1471 = vsub.f32 1.5, %v1470
    %v1472 = vmul.f32 %v1467, %v1471
    %vm1473 = vweird.f32 %v1465
    %vm1474 = vweird.f32 %v1467
    %vm1475 = vmor %vm1473, %vm1474
    %v1476 = vsel %vm1475, %v1467, %v1472
    %v1477 = vrsqrt.pop %v1466
    %v1478 = vmul.f32 %v1477, %v1466
    %v1479 = vmul.f32 %v1478, %v1477
    %v1480 = vmul.f32 0.5, %v1479
    %v1481 = vsub.f32 1.5, %v1480
    %v1482 = vmul.f32 %v1477, %v1481
    %vm1483 = vweird.f32 %v1466
    %vm1484 = vweird.f32 %v1477
    %vm1485 = vmor %vm1483, %vm1484
    %v1486 = vsel %vm1485, %v1477, %v1482
    %v1487 = vmul.f32 %v1453, %v1476
    %v1488 = vmul.f32 %v1454, %v1486
    %v1490 = vperm.slane %v1442, 0
    %v1492 = vmul.f32 %v1487, %v1490
    %v1493 = vmul.f32 %v1488, %v1490
    %v1495 = vperm.slane %v1444, 0
    %v1497 = vadd.f32 %v1492, %v1495
    %v1498 = vadd.f32 %v1493, %v1495
    %1499 = vst.msk [vmem:[#allocation2] sm:$0xff] %vm68, %v1497
    %1500 = vst.msk [vmem:[#allocation2 + $0x8] sm:$0xff] %vm68, %v1498
    %v1502 = vrot.slane %v1498, 7
    %vm1504 = vcmask 1040384
    %v1505 = vsel %vm1504, %v1497, %v1502
    %v1506 = vld [vmem:[%s16] sm:$0xff]
    %v1507 = vld [vmem:[%s16 + $0x8] sm:$0xff]
    %v1508 = vld [vmem:[%s16 + $0x10] sm:$0xff]
    %v1509 = vld [vmem:[%s16 + $0x18] sm:$0xff]
    %v1510 = vld [vmem:[%s17] sm:$0x1]
    %v1512 = vperm.slane %v1510, 0
    %v1515 = vsel %vm68, %v1505, 0
    %1517 = vmatpush.msra.mxu0 0.0
    %1518 = vmatpush.msra.mxu0 0.0
    %1519 = vmatpush.msra.mxu0 0.0
    %1520 = vmatpush.msra.mxu0 0.0
    %1521 = vmatpush.msra.mxu0 0.0
    %1522 = vmatpush.msra.mxu0 0.0
    %1523 = vmatpush.msra.mxu0 0.0
    %1524 = vmatpush.msra.mxu0 0.0
    %1525 = vmatpush.msra.mxu0 0.0
    %1526 = vmatpush.msra.mxu0 0.0
    %1527 = vmatpush.msra.mxu0 0.0
    %1528 = vmatpush.msra.mxu0 0.0
    %1529 = vmatpush.msra.mxu0 %v1509
    %1530 = vmatpush.msra.mxu0 %v1508
    %1531 = vmatpush.msra.mxu0 %v1507
    %1532 = vmatpush.msra.mxu0 %v1506
    %1533 = vmatmul.f32.gmra.mxu0 %v1515
    %v1534 = vpop.f32.mrf.mxu0
    %v1535 = vadd.f32 %v1512, %v1534
    %1536 = vdwg.mxu0
    %v1537 = vtanh.pop %v1535
    %vm1538 = vcmask 254976
    %1539 = vst.msk [vmem:[#allocation4] sm:$0x3] %vm1538, %v1537
    // Predicated region
    $region74: #{bert_encoder_forward.1} parent=1 // pred_check
      _
    $region75: #{bert_encoder_forward.1} parent=1 // pred_check_branch
      %1541 = sbr.rel (0) target = $region77
    $region76: #{bert_encoder_forward.1} parent=1 // pred_region
      %1543 = vsyncadd [#allocation3], 0
      %s1544 = sshll.u32 [#allocation2], 4
      %s1545 = int_to_ptr.vmem [resolvable:$true] %s1544
      %s1546 = sshll.u32 %s18, 4
      %s1547 = int_to_ptr.hbm [resolvable:$true] %s1546
      %1552 = dma.vmem_to_hbm [thread:$0]  %s1545, 256, %s1547, [#allocation3], 128, 128, 8
    $region77: #{bert_encoder_forward.1} parent=1 // pred_fallthru
      _
    // Predicated region
    $region78: #{bert_encoder_forward.1} parent=1 // pred_check
      _
    $region79: #{bert_encoder_forward.1} parent=1 // pred_check_branch
      %1554 = sbr.rel (0) target = $region81
    $region80: #{bert_encoder_forward.1} parent=1 // pred_region
      %1556 = vsyncadd [#allocation5], 0
      %s1558 = sshll.u32 [#allocation4], 4
      %s1559 = int_to_ptr.vmem [resolvable:$true] %s1558
      %s1560 = sshll.u32 %s19, 4
      %s1561 = int_to_ptr.hbm [resolvable:$true] %s1560
      %1563 = dma.vmem_to_hbm [thread:$0]  %s1559, 32, %s1561, [#allocation5]
    $region81: #{bert_encoder_forward.1} parent=1 // pred_fallthru
      _
    // Predicated region
    $region82: #{bert_encoder_forward.1} parent=1 // pred_check
      _
    $region83: #{bert_encoder_forward.1} parent=1 // pred_check_branch
      %1565 = sbr.rel (0) target = $region85
    $region84: #{bert_encoder_forward.1} parent=1 // pred_region
      %1567 = dma.done [#allocation3], 256
    $region85: #{bert_encoder_forward.1} parent=1 // pred_fallthru
      _
    // Predicated region
    $region86: #{bert_encoder_forward.1} parent=1 // pred_check
      _
    $region87: #{bert_encoder_forward.1} parent=1 // pred_check_branch
      %1569 = sbr.rel (0) target = $region89
    $region88: #{bert_encoder_forward.1} parent=1 // pred_region
      %1571 = dma.done [#allocation5], 32
    $region89: #{bert_encoder_forward.1} parent=1 // pred_fallthru
      _
    %1572 = vsyncpa [#allocation3], 1
    %1573 = vsyncpa [#allocation5], 1

</llo_original>
